<compile_context>
chip_gen: v7x
topology: tpu7x:2x2x1
jax: 0.10.0
libtpu: 0.0.40
codegen_flags: <defaults>
</compile_context>

<pallas_src>
import jax
import jax.numpy as jnp
from jax import lax
from jax.experimental import pallas as pl
from jax.experimental.pallas import tpu as pltpu


def _fitting_error_kernel(x_ref, loss_ref):
    """x_ref: (2*E, TR, TC) f32 (real echoes then imag echoes).
    loss_ref: (1, 1) f32 in SMEM — per-tile partial sum of squared error."""
    E = x_ref.shape[0] // 2
    zeros = jnp.zeros(x_ref.shape[1:], dtype=jnp.float32)

    # ------------------------------------------------------------------
    # Pass 1 (fused): magnitude, ARLO accumulators, log-linear water fit,
    # and the phase-slope correlation  sum_e conj(c_e) * c_{e+1}.
    # ARLO (Pei et al. 2015), te = 0..E-1 with unit spacing -> constant coeffs.
    # ------------------------------------------------------------------
    alpha = 2.0
    beta = 1.0 / 3.0
    gamma = 1.0 / 3.0
    c0 = 2.0 - alpha + gamma          # = 1/3
    c1 = alpha - beta - 2.0 * gamma   # = 1
    c2 = beta + gamma                 # = 2/3
    t_mean = (E - 1) / 2.0
    inv_t_var = 1.0 / float(sum((e - t_mean) ** 2 for e in range(E)))
    eps = 1e-8

    s_yy = zeros
    s_yx = zeros
    s_xx = zeros
    sum_log = zeros
    cov = zeros
    dr = zeros
    di = zeros
    m_prev2 = zeros
    m_prev1 = zeros
    xr_prev = zeros
    xi_prev = zeros
    for e in range(E):
        xr_e = x_ref[e]
        xi_e = x_ref[E + e]
        mag_e = jnp.sqrt(xr_e * xr_e + xi_e * xi_e)

        # water fit (closed-form log-linear LS): since sum_e (e - t_mean) == 0,
        # the "- l_mean" term of the covariance is mathematically redundant.
        log_e = jnp.log(mag_e + eps)
        sum_log = sum_log + log_e
        cov = cov + (e - t_mean) * log_e

        # ARLO accumulators, sliding 3-echo window (j = e - 2)
        if e >= 2:
            y1 = c0 * m_prev2 + c1 * m_prev1 + c2 * mag_e
            x1 = m_prev2 - mag_e
            s_yy = s_yy + y1 * y1
            s_yx = s_yx + y1 * x1
            s_xx = s_xx + x1 * x1

        # phase slope correlation
        if e >= 1:
            dr = dr + xr_prev * xr_e + xi_prev * xi_e
            di = di + xr_prev * xi_e - xi_prev * xr_e

        m_prev2, m_prev1 = m_prev1, mag_e
        xr_prev, xi_prev = xr_e, xi_e

    # r2s = (s_yx + beta*s_xx) / (beta*s_yx + s_yy), NaN/Inf -> 0 (guarded,
    # exact divide: runs once per tile, and its error would otherwise compound
    # through the (E-1)-step exp(-r2s)^e running product).
    num = s_yx + beta * s_xx
    den = beta * s_yx + s_yy
    den_ok = den != 0.0
    r2s = jnp.where(den_ok, num / jnp.where(den_ok, den, 1.0), 0.0)

    # water = exp(intercept) of log|S_e| vs e.
    # TODO(synk): exact Levenberg-Marquardt iterations of fit_R2_LM unavailable;
    # closed-form log-linear least squares is used for the amplitude.
    slope = cov * inv_t_var
    intercept = sum_log * (1.0 / E) - slope * t_mean

    # exp(i*p1) = normalize(dr + i*di)  (rsqrt-based normalization)
    d2 = dr * dr + di * di
    d_ok = d2 > 0.0
    inv_d = lax.rsqrt(jnp.where(d_ok, d2, 1.0))
    ur = jnp.where(d_ok, dr * inv_d, 1.0)   # Re exp(i*p1)
    ui = jnp.where(d_ok, di * inv_d, 0.0)   # Im exp(i*p1)

    # ------------------------------------------------------------------
    # Pass 2: exp(i*p0) = normalize( sum_e c_e * conj(u^e) ), with the complex
    # power u^e carried as a 2-plane running product (no stored power list;
    # recompute beats cache+reload on v5e's single vst slot).
    # TODO(synk): exact iterative fit_complex unavailable; magnitude-weighted
    # closed-form phase estimate is used (avoids arctan2/sin/cos in-kernel).
    # ------------------------------------------------------------------
    wr = zeros
    wi = zeros
    pr = jnp.ones_like(zeros)
    pi_ = zeros
    for e in range(E):
        xr_e = x_ref[e]
        xi_e = x_ref[E + e]
        wr = wr + xr_e * pr + xi_e * pi_
        wi = wi + xi_e * pr - xr_e * pi_
        if e + 1 < E:
            pr, pi_ = pr * ur - pi_ * ui, pr * ui + pi_ * ur

    w2 = wr * wr + wi * wi
    w_ok = w2 > 0.0
    inv_w = lax.rsqrt(jnp.where(w_ok, w2, 1.0))
    vr = jnp.where(w_ok, wr * inv_w, 1.0)   # Re exp(i*p0)
    vi = jnp.where(w_ok, wi * inv_w, 0.0)   # Im exp(i*p0)

    # ------------------------------------------------------------------
    # Pass 3: x_pred[e] = amp * {cos,sin}(p0 + p1*e), NaN->0, (>1)->0, SSE.
    # amp carried as a running product: amp_0 = exp(intercept), amp *= exp(-r2s).
    # The NaN and >1.0 guards are fused: `where(p <= 1, p, 0)` (NaN fails <=1).
    # ------------------------------------------------------------------
    amp = jnp.exp(intercept)     # water (M0)
    decay = jnp.exp(-r2s)
    pr = jnp.ones_like(zeros)    # Re u^e
    pi_ = zeros                  # Im u^e
    sq = zeros
    for e in range(E):
        xr_e = x_ref[e]
        xi_e = x_ref[E + e]
        cos_t = vr * pr - vi * pi_       # cos(p0 + p1*e)
        sin_t = vr * pi_ + vi * pr       # sin(p0 + p1*e)
        pred_r = amp * cos_t
        pred_i = amp * sin_t
        pred_r = jnp.where(pred_r <= 1.0, pred_r, 0.0)   # NaN -> 0, >1 -> 0
        pred_i = jnp.where(pred_i <= 1.0, pred_i, 0.0)   # NaN -> 0, >1 -> 0
        d_r = xr_e - pred_r
        d_i = xi_e - pred_i
        sq = sq + d_r * d_r + d_i * d_i
        if e + 1 < E:
            amp = amp * decay
            pr, pi_ = pr * ur - pi_ * ui, pr * ui + pi_ * ur

    loss_ref[0, 0] = jnp.sum(sq)


# Cap the compute tile by vreg footprint: pass 1/3 keep ~11-15 live (TR, TC) f32
# accumulators and there are only 64 vregs (each (TR,TC) array costs TR*TC/1024
# vregs).  TR*TC <= 2048 keeps every live array at <= 2 vregs so the kernel stays
# VALU-bound instead of spill/load-store-bound.  Extra rows/cols become grid steps.
_TILE_ELEM_CAP = 2048


def _pick_tiles(nrow, ncol):
    """Largest legal (TR, TC) with TR*TC <= _TILE_ELEM_CAP.

    TR: multiple of 8 dividing nrow, or nrow itself (full extent).
    TC: multiple of 128 dividing ncol, or ncol itself (full extent).
    If even the smallest legal tile exceeds the cap, take the smallest legal one.
    """
    tr_cands = sorted({d for d in range(8, nrow + 1, 8) if nrow % d == 0} | {nrow})
    tc_cands = sorted({d for d in range(128, ncol + 1, 128) if ncol % d == 0} | {ncol})
    best = None
    fallback = None
    for tr in tr_cands:
        for tc in tc_cands:
            elems = tr * tc
            if fallback is None or elems < fallback[0]:
                fallback = (elems, tr, tc)
            if elems <= _TILE_ELEM_CAP and (best is None or elems > best[0]):
                best = (elems, tr, tc)
    if best is None:
        # TODO(synk): shape too coarse to tile under the vreg cap (e.g. nrow not
        # a multiple of 8 and ncol < 128); falls back to the smallest legal tile
        # and accepts compiler spill rather than risking ragged/padded reads.
        best = fallback
    return best[1], best[2]


def _vmem_limit_bytes(block_bytes):
    """Generation-aware VMEM limit: >=25% headroom above the double-buffered
    input block, capped at half the physical VMEM (64 MiB on v7x)."""
    try:
        phys = pltpu.get_tpu_info().vmem_capacity_bytes
    except Exception:
        phys = 64 << 20   # conservative: v7x per-TensorCore physical VMEM
    want = max(4 << 20, int(1.25 * 2 * block_bytes))
    return int(min(phys // 2, want))


class FittingErrorPallas:
    """JAX/Pallas port of FittingError (forward value only; no autograd needed)."""

    def __init__(self, necho=6, nrow=16, ncol=128, tile_rows=None, tile_cols=None):
        assert necho >= 3, "ARLO needs at least 3 echoes"
        tr, tc = _pick_tiles(nrow, ncol)
        if tile_rows is not None:
            tr = tile_rows
        if tile_cols is not None:
            tc = tile_cols
        assert nrow % tr == 0 and (tr % 8 == 0 or tr == nrow)
        assert ncol % tc == 0 and (tc % 128 == 0 or tc == ncol)
        self.necho = necho
        self.nrow = nrow
        self.ncol = ncol
        self.tile_rows = tr
        self.tile_cols = tc

    def __call__(self, x):
        E, R, C = self.necho, self.nrow, self.ncol
        TR, TC = self.tile_rows, self.tile_cols
        assert x.shape == (1, 2 * E, R, C)

        if x.dtype != jnp.float32:
            x = x.astype(jnp.float32)
        # (1, 2E, R, C) -> (2E, R, C): metadata-only reshape, no HBM copy
        # (the real/imag "deconcate" is done by indexing inside the kernel).
        x_flat = x.reshape(2 * E, R, C)

        nr = R // TR
        nc = C // TC
        block_bytes = 2 * E * TR * TC * 4
        vmem_limit = _vmem_limit_bytes(block_bytes)

        # 2-D grid, both axes "parallel": at production sizes the vreg cap makes
        # many tiles, so v7x's two TensorCores both get work; at the tiny toy
        # default (one tile) wall clock is dispatch-overhead dominated anyway.
        partials = pl.pallas_call(
            _fitting_error_kernel,
            out_shape=jax.ShapeDtypeStruct((nr, nc), jnp.float32),
            grid_spec=pltpu.PrefetchScalarGridSpec(
                num_scalar_prefetch=0,
                grid=(nr, nc),
                in_specs=[
                    pl.BlockSpec((2 * E, TR, TC), lambda i, j: (0, i, j)),
                ],
                out_specs=pl.BlockSpec(
                    (1, 1), lambda i, j: (i, j),
                    memory_space=pltpu.MemorySpace.SMEM),
            ),
            compiler_params=pltpu.CompilerParams(
                dimension_semantics=("parallel", "parallel"),
                vmem_limit_bytes=vmem_limit),
        )(x_flat)

        # loss = mean over the full (1, 2, necho, nrow, ncol) tensor.
        return jnp.sum(partials) / jnp.float32(2 * E * R * C)


if __name__ == "__main__":
    necho, nrow, ncol = 6, 16, 128

    key = jax.random.PRNGKey(0)
    x = 0.5 * jax.random.normal(key, (1, 2 * necho, nrow, ncol), dtype=jnp.float32)

    model = FittingErrorPallas(necho=necho, nrow=nrow, ncol=ncol)
    loss = model(x)
    loss = jax.block_until_ready(loss)
    assert loss.shape == () and jnp.isfinite(loss)
    print("KERNEL_OK")
</pallas_src>

<mosaic_0001>
module attributes {stable_mosaic.version = 11 : i64} {
  func.func @_fitting_error_kernel(%arg0: i32, %arg1: i32, %arg2: memref<12x16x128xf32, #tpu.memory_space<vmem>>, %arg3: memref<1x1xf32, #tpu.memory_space<smem>>) attributes {dimension_semantics = [#tpu.dimension_semantics<parallel>, #tpu.dimension_semantics<parallel>], iteration_bounds = array<i64: 1, 1>, scalar_prefetch = 0 : i64, scratch_operands = 0 : i64, tpu.core_type = #tpu.core_type<tc>, window_params = [{transform_indices = @transform_0, window_bounds = array<i64: 12, 16, 128>}, {transform_indices = @transform_1, window_bounds = array<i64: 1, 1>}]} {
    %cst = arith.constant 0.000000e+00 : f32
    %0 = vector.broadcast %cst : f32 to vector<16x128xf32>
    %c0 = arith.constant 0 : index
    %c0_0 = arith.constant 0 : index
    %c0_1 = arith.constant 0 : index
    %1 = vector.load %arg2[%c0, %c0_0, %c0_1] : memref<12x16x128xf32, #tpu.memory_space<vmem>>, vector<1x16x128xf32>
    %2 = vector.shape_cast %1 : vector<1x16x128xf32> to vector<16x128xf32>
    %c6 = arith.constant 6 : index
    %c0_2 = arith.constant 0 : index
    %c0_3 = arith.constant 0 : index
    %3 = vector.load %arg2[%c6, %c0_2, %c0_3] : memref<12x16x128xf32, #tpu.memory_space<vmem>>, vector<1x16x128xf32>
    %4 = vector.shape_cast %3 : vector<1x16x128xf32> to vector<16x128xf32>
    %5 = arith.mulf %2, %2 : vector<16x128xf32>
    %6 = arith.mulf %4, %4 : vector<16x128xf32>
    %7 = arith.addf %5, %6 : vector<16x128xf32>
    %8 = math.sqrt %7 : vector<16x128xf32>
    %cst_4 = arith.constant 9.99999993E-9 : f32
    %9 = vector.broadcast %cst_4 : f32 to vector<16x128xf32>
    %10 = arith.addf %8, %9 : vector<16x128xf32>
    %11 = math.log %10 : vector<16x128xf32>
    %12 = arith.addf %0, %11 : vector<16x128xf32>
    %cst_5 = arith.constant -2.500000e+00 : f32
    %13 = vector.broadcast %cst_5 : f32 to vector<16x128xf32>
    %14 = arith.mulf %13, %11 : vector<16x128xf32>
    %15 = arith.addf %0, %14 : vector<16x128xf32>
    %c1 = arith.constant 1 : index
    %c0_6 = arith.constant 0 : index
    %c0_7 = arith.constant 0 : index
    %16 = vector.load %arg2[%c1, %c0_6, %c0_7] : memref<12x16x128xf32, #tpu.memory_space<vmem>>, vector<1x16x128xf32>
    %17 = vector.shape_cast %16 : vector<1x16x128xf32> to vector<16x128xf32>
    %c7 = arith.constant 7 : index
    %c0_8 = arith.constant 0 : index
    %c0_9 = arith.constant 0 : index
    %18 = vector.load %arg2[%c7, %c0_8, %c0_9] : memref<12x16x128xf32, #tpu.memory_space<vmem>>, vector<1x16x128xf32>
    %19 = vector.shape_cast %18 : vector<1x16x128xf32> to vector<16x128xf32>
    %20 = arith.mulf %17, %17 : vector<16x128xf32>
    %21 = arith.mulf %19, %19 : vector<16x128xf32>
    %22 = arith.addf %20, %21 : vector<16x128xf32>
    %23 = math.sqrt %22 : vector<16x128xf32>
    %cst_10 = arith.constant 9.99999993E-9 : f32
    %24 = vector.broadcast %cst_10 : f32 to vector<16x128xf32>
    %25 = arith.addf %23, %24 : vector<16x128xf32>
    %26 = math.log %25 : vector<16x128xf32>
    %27 = arith.addf %12, %26 : vector<16x128xf32>
    %cst_11 = arith.constant -1.500000e+00 : f32
    %28 = vector.broadcast %cst_11 : f32 to vector<16x128xf32>
    %29 = arith.mulf %28, %26 : vector<16x128xf32>
    %30 = arith.addf %15, %29 : vector<16x128xf32>
    %31 = arith.mulf %2, %17 : vector<16x128xf32>
    %32 = arith.addf %0, %31 : vector<16x128xf32>
    %33 = arith.mulf %4, %19 : vector<16x128xf32>
    %34 = arith.addf %32, %33 : vector<16x128xf32>
    %35 = arith.mulf %2, %19 : vector<16x128xf32>
    %36 = arith.addf %0, %35 : vector<16x128xf32>
    %37 = arith.mulf %4, %17 : vector<16x128xf32>
    %38 = arith.subf %36, %37 : vector<16x128xf32>
    %c2 = arith.constant 2 : index
    %c0_12 = arith.constant 0 : index
    %c0_13 = arith.constant 0 : index
    %39 = vector.load %arg2[%c2, %c0_12, %c0_13] : memref<12x16x128xf32, #tpu.memory_space<vmem>>, vector<1x16x128xf32>
    %40 = vector.shape_cast %39 : vector<1x16x128xf32> to vector<16x128xf32>
    %c8 = arith.constant 8 : index
    %c0_14 = arith.constant 0 : index
    %c0_15 = arith.constant 0 : index
    %41 = vector.load %arg2[%c8, %c0_14, %c0_15] : memref<12x16x128xf32, #tpu.memory_space<vmem>>, vector<1x16x128xf32>
    %42 = vector.shape_cast %41 : vector<1x16x128xf32> to vector<16x128xf32>
    %43 = arith.mulf %40, %40 : vector<16x128xf32>
    %44 = arith.mulf %42, %42 : vector<16x128xf32>
    %45 = arith.addf %43, %44 : vector<16x128xf32>
    %46 = math.sqrt %45 : vector<16x128xf32>
    %cst_16 = arith.constant 9.99999993E-9 : f32
    %47 = vector.broadcast %cst_16 : f32 to vector<16x128xf32>
    %48 = arith.addf %46, %47 : vector<16x128xf32>
    %49 = math.log %48 : vector<16x128xf32>
    %50 = arith.addf %27, %49 : vector<16x128xf32>
    %cst_17 = arith.constant -5.000000e-01 : f32
    %51 = vector.broadcast %cst_17 : f32 to vector<16x128xf32>
    %52 = arith.mulf %51, %49 : vector<16x128xf32>
    %53 = arith.addf %30, %52 : vector<16x128xf32>
    %cst_18 = arith.constant 0.333333343 : f32
    %54 = vector.broadcast %cst_18 : f32 to vector<16x128xf32>
    %55 = arith.mulf %54, %8 : vector<16x128xf32>
    %cst_19 = arith.constant 1.000000e+00 : f32
    %56 = vector.broadcast %cst_19 : f32 to vector<16x128xf32>
    %57 = arith.mulf %56, %23 : vector<16x128xf32>
    %58 = arith.addf %55, %57 : vector<16x128xf32>
    %cst_20 = arith.constant 0.666666686 : f32
    %59 = vector.broadcast %cst_20 : f32 to vector<16x128xf32>
    %60 = arith.mulf %59, %46 : vector<16x128xf32>
    %61 = arith.addf %58, %60 : vector<16x128xf32>
    %62 = arith.subf %8, %46 : vector<16x128xf32>
    %63 = arith.mulf %61, %61 : vector<16x128xf32>
    %64 = arith.addf %0, %63 : vector<16x128xf32>
    %65 = arith.mulf %61, %62 : vector<16x128xf32>
    %66 = arith.addf %0, %65 : vector<16x128xf32>
    %67 = arith.mulf %62, %62 : vector<16x128xf32>
    %68 = arith.addf %0, %67 : vector<16x128xf32>
    %69 = arith.mulf %17, %40 : vector<16x128xf32>
    %70 = arith.addf %34, %69 : vector<16x128xf32>
    %71 = arith.mulf %19, %42 : vector<16x128xf32>
    %72 = arith.addf %70, %71 : vector<16x128xf32>
    %73 = arith.mulf %17, %42 : vector<16x128xf32>
    %74 = arith.addf %38, %73 : vector<16x128xf32>
    %75 = arith.mulf %19, %40 : vector<16x128xf32>
    %76 = arith.subf %74, %75 : vector<16x128xf32>
    %c3 = arith.constant 3 : index
    %c0_21 = arith.constant 0 : index
    %c0_22 = arith.constant 0 : index
    %77 = vector.load %arg2[%c3, %c0_21, %c0_22] : memref<12x16x128xf32, #tpu.memory_space<vmem>>, vector<1x16x128xf32>
    %78 = vector.shape_cast %77 : vector<1x16x128xf32> to vector<16x128xf32>
    %c9 = arith.constant 9 : index
    %c0_23 = arith.constant 0 : index
    %c0_24 = arith.constant 0 : index
    %79 = vector.load %arg2[%c9, %c0_23, %c0_24] : memref<12x16x128xf32, #tpu.memory_space<vmem>>, vector<1x16x128xf32>
    %80 = vector.shape_cast %79 : vector<1x16x128xf32> to vector<16x128xf32>
    %81 = arith.mulf %78, %78 : vector<16x128xf32>
    %82 = arith.mulf %80, %80 : vector<16x128xf32>
    %83 = arith.addf %81, %82 : vector<16x128xf32>
    %84 = math.sqrt %83 : vector<16x128xf32>
    %cst_25 = arith.constant 9.99999993E-9 : f32
    %85 = vector.broadcast %cst_25 : f32 to vector<16x128xf32>
    %86 = arith.addf %84, %85 : vector<16x128xf32>
    %87 = math.log %86 : vector<16x128xf32>
    %88 = arith.addf %50, %87 : vector<16x128xf32>
    %cst_26 = arith.constant 5.000000e-01 : f32
    %89 = vector.broadcast %cst_26 : f32 to vector<16x128xf32>
    %90 = arith.mulf %89, %87 : vector<16x128xf32>
    %91 = arith.addf %53, %90 : vector<16x128xf32>
    %cst_27 = arith.constant 0.333333343 : f32
    %92 = vector.broadcast %cst_27 : f32 to vector<16x128xf32>
    %93 = arith.mulf %92, %23 : vector<16x128xf32>
    %cst_28 = arith.constant 1.000000e+00 : f32
    %94 = vector.broadcast %cst_28 : f32 to vector<16x128xf32>
    %95 = arith.mulf %94, %46 : vector<16x128xf32>
    %96 = arith.addf %93, %95 : vector<16x128xf32>
    %cst_29 = arith.constant 0.666666686 : f32
    %97 = vector.broadcast %cst_29 : f32 to vector<16x128xf32>
    %98 = arith.mulf %97, %84 : vector<16x128xf32>
    %99 = arith.addf %96, %98 : vector<16x128xf32>
    %100 = arith.subf %23, %84 : vector<16x128xf32>
    %101 = arith.mulf %99, %99 : vector<16x128xf32>
    %102 = arith.addf %64, %101 : vector<16x128xf32>
    %103 = arith.mulf %99, %100 : vector<16x128xf32>
    %104 = arith.addf %66, %103 : vector<16x128xf32>
    %105 = arith.mulf %100, %100 : vector<16x128xf32>
    %106 = arith.addf %68, %105 : vector<16x128xf32>
    %107 = arith.mulf %40, %78 : vector<16x128xf32>
    %108 = arith.addf %72, %107 : vector<16x128xf32>
    %109 = arith.mulf %42, %80 : vector<16x128xf32>
    %110 = arith.addf %108, %109 : vector<16x128xf32>
    %111 = arith.mulf %40, %80 : vector<16x128xf32>
    %112 = arith.addf %76, %111 : vector<16x128xf32>
    %113 = arith.mulf %42, %78 : vector<16x128xf32>
    %114 = arith.subf %112, %113 : vector<16x128xf32>
    %c4 = arith.constant 4 : index
    %c0_30 = arith.constant 0 : index
    %c0_31 = arith.constant 0 : index
    %115 = vector.load %arg2[%c4, %c0_30, %c0_31] : memref<12x16x128xf32, #tpu.memory_space<vmem>>, vector<1x16x128xf32>
    %116 = vector.shape_cast %115 : vector<1x16x128xf32> to vector<16x128xf32>
    %c10 = arith.constant 10 : index
    %c0_32 = arith.constant 0 : index
    %c0_33 = arith.constant 0 : index
    %117 = vector.load %arg2[%c10, %c0_32, %c0_33] : memref<12x16x128xf32, #tpu.memory_space<vmem>>, vector<1x16x128xf32>
    %118 = vector.shape_cast %117 : vector<1x16x128xf32> to vector<16x128xf32>
    %119 = arith.mulf %116, %116 : vector<16x128xf32>
    %120 = arith.mulf %118, %118 : vector<16x128xf32>
    %121 = arith.addf %119, %120 : vector<16x128xf32>
    %122 = math.sqrt %121 : vector<16x128xf32>
    %cst_34 = arith.constant 9.99999993E-9 : f32
    %123 = vector.broadcast %cst_34 : f32 to vector<16x128xf32>
    %124 = arith.addf %122, %123 : vector<16x128xf32>
    %125 = math.log %124 : vector<16x128xf32>
    %126 = arith.addf %88, %125 : vector<16x128xf32>
    %cst_35 = arith.constant 1.500000e+00 : f32
    %127 = vector.broadcast %cst_35 : f32 to vector<16x128xf32>
    %128 = arith.mulf %127, %125 : vector<16x128xf32>
    %129 = arith.addf %91, %128 : vector<16x128xf32>
    %cst_36 = arith.constant 0.333333343 : f32
    %130 = vector.broadcast %cst_36 : f32 to vector<16x128xf32>
    %131 = arith.mulf %130, %46 : vector<16x128xf32>
    %cst_37 = arith.constant 1.000000e+00 : f32
    %132 = vector.broadcast %cst_37 : f32 to vector<16x128xf32>
    %133 = arith.mulf %132, %84 : vector<16x128xf32>
    %134 = arith.addf %131, %133 : vector<16x128xf32>
    %cst_38 = arith.constant 0.666666686 : f32
    %135 = vector.broadcast %cst_38 : f32 to vector<16x128xf32>
    %136 = arith.mulf %135, %122 : vector<16x128xf32>
    %137 = arith.addf %134, %136 : vector<16x128xf32>
    %138 = arith.subf %46, %122 : vector<16x128xf32>
    %139 = arith.mulf %137, %137 : vector<16x128xf32>
    %140 = arith.addf %102, %139 : vector<16x128xf32>
    %141 = arith.mulf %137, %138 : vector<16x128xf32>
    %142 = arith.addf %104, %141 : vector<16x128xf32>
    %143 = arith.mulf %138, %138 : vector<16x128xf32>
    %144 = arith.addf %106, %143 : vector<16x128xf32>
    %145 = arith.mulf %78, %116 : vector<16x128xf32>
    %146 = arith.addf %110, %145 : vector<16x128xf32>
    %147 = arith.mulf %80, %118 : vector<16x128xf32>
    %148 = arith.addf %146, %147 : vector<16x128xf32>
    %149 = arith.mulf %78, %118 : vector<16x128xf32>
    %150 = arith.addf %114, %149 : vector<16x128xf32>
    %151 = arith.mulf %80, %116 : vector<16x128xf32>
    %152 = arith.subf %150, %151 : vector<16x128xf32>
    %c5 = arith.constant 5 : index
    %c0_39 = arith.constant 0 : index
    %c0_40 = arith.constant 0 : index
    %153 = vector.load %arg2[%c5, %c0_39, %c0_40] : memref<12x16x128xf32, #tpu.memory_space<vmem>>, vector<1x16x128xf32>
    %154 = vector.shape_cast %153 : vector<1x16x128xf32> to vector<16x128xf32>
    %c11 = arith.constant 11 : index
    %c0_41 = arith.constant 0 : index
    %c0_42 = arith.constant 0 : index
    %155 = vector.load %arg2[%c11, %c0_41, %c0_42] : memref<12x16x128xf32, #tpu.memory_space<vmem>>, vector<1x16x128xf32>
    %156 = vector.shape_cast %155 : vector<1x16x128xf32> to vector<16x128xf32>
    %157 = arith.mulf %154, %154 : vector<16x128xf32>
    %158 = arith.mulf %156, %156 : vector<16x128xf32>
    %159 = arith.addf %157, %158 : vector<16x128xf32>
    %160 = math.sqrt %159 : vector<16x128xf32>
    %cst_43 = arith.constant 9.99999993E-9 : f32
    %161 = vector.broadcast %cst_43 : f32 to vector<16x128xf32>
    %162 = arith.addf %160, %161 : vector<16x128xf32>
    %163 = math.log %162 : vector<16x128xf32>
    %164 = arith.addf %126, %163 : vector<16x128xf32>
    %cst_44 = arith.constant 2.500000e+00 : f32
    %165 = vector.broadcast %cst_44 : f32 to vector<16x128xf32>
    %166 = arith.mulf %165, %163 : vector<16x128xf32>
    %167 = arith.addf %129, %166 : vector<16x128xf32>
    %cst_45 = arith.constant 0.333333343 : f32
    %168 = vector.broadcast %cst_45 : f32 to vector<16x128xf32>
    %169 = arith.mulf %168, %84 : vector<16x128xf32>
    %cst_46 = arith.constant 1.000000e+00 : f32
    %170 = vector.broadcast %cst_46 : f32 to vector<16x128xf32>
    %171 = arith.mulf %170, %122 : vector<16x128xf32>
    %172 = arith.addf %169, %171 : vector<16x128xf32>
    %cst_47 = arith.constant 0.666666686 : f32
    %173 = vector.broadcast %cst_47 : f32 to vector<16x128xf32>
    %174 = arith.mulf %173, %160 : vector<16x128xf32>
    %175 = arith.addf %172, %174 : vector<16x128xf32>
    %176 = arith.subf %84, %160 : vector<16x128xf32>
    %177 = arith.mulf %175, %175 : vector<16x128xf32>
    %178 = arith.addf %140, %177 : vector<16x128xf32>
    %179 = arith.mulf %175, %176 : vector<16x128xf32>
    %180 = arith.addf %142, %179 : vector<16x128xf32>
    %181 = arith.mulf %176, %176 : vector<16x128xf32>
    %182 = arith.addf %144, %181 : vector<16x128xf32>
    %183 = arith.mulf %116, %154 : vector<16x128xf32>
    %184 = arith.addf %148, %183 : vector<16x128xf32>
    %185 = arith.mulf %118, %156 : vector<16x128xf32>
    %186 = arith.addf %184, %185 : vector<16x128xf32>
    %187 = arith.mulf %116, %156 : vector<16x128xf32>
    %188 = arith.addf %152, %187 : vector<16x128xf32>
    %189 = arith.mulf %118, %154 : vector<16x128xf32>
    %190 = arith.subf %188, %189 : vector<16x128xf32>
    %cst_48 = arith.constant 0.333333343 : f32
    %191 = vector.broadcast %cst_48 : f32 to vector<16x128xf32>
    %192 = arith.mulf %191, %182 : vector<16x128xf32>
    %193 = arith.addf %180, %192 : vector<16x128xf32>
    %cst_49 = arith.constant 0.333333343 : f32
    %194 = vector.broadcast %cst_49 : f32 to vector<16x128xf32>
    %195 = arith.mulf %194, %180 : vector<16x128xf32>
    %196 = arith.addf %195, %178 : vector<16x128xf32>
    %cst_50 = arith.constant 0.000000e+00 : f32
    %197 = vector.broadcast %cst_50 : f32 to vector<16x128xf32>
    %198 = arith.cmpf one, %196, %197 : vector<16x128xf32>
    %cst_51 = arith.constant 1.000000e+00 : f32
    %199 = vector.broadcast %cst_51 : f32 to vector<16x128xf32>
    %200 = arith.select %198, %196, %199 : vector<16x128xi1>, vector<16x128xf32>
    %201 = arith.divf %193, %200 : vector<16x128xf32>
    %cst_52 = arith.constant 0.000000e+00 : f32
    %202 = vector.broadcast %cst_52 : f32 to vector<16x128xf32>
    %203 = arith.select %198, %201, %202 : vector<16x128xi1>, vector<16x128xf32>
    %cst_53 = arith.constant 0.0571428575 : f32
    %204 = vector.broadcast %cst_53 : f32 to vector<16x128xf32>
    %205 = arith.mulf %167, %204 : vector<16x128xf32>
    %cst_54 = arith.constant 0.166666672 : f32
    %206 = vector.broadcast %cst_54 : f32 to vector<16x128xf32>
    %207 = arith.mulf %164, %206 : vector<16x128xf32>
    %cst_55 = arith.constant 2.500000e+00 : f32
    %208 = vector.broadcast %cst_55 : f32 to vector<16x128xf32>
    %209 = arith.mulf %205, %208 : vector<16x128xf32>
    %210 = arith.subf %207, %209 : vector<16x128xf32>
    %211 = arith.mulf %186, %186 : vector<16x128xf32>
    %212 = arith.mulf %190, %190 : vector<16x128xf32>
    %213 = arith.addf %211, %212 : vector<16x128xf32>
    %cst_56 = arith.constant 0.000000e+00 : f32
    %214 = vector.broadcast %cst_56 : f32 to vector<16x128xf32>
    %215 = arith.cmpf ogt, %213, %214 : vector<16x128xf32>
    %cst_57 = arith.constant 1.000000e+00 : f32
    %216 = vector.broadcast %cst_57 : f32 to vector<16x128xf32>
    %217 = arith.select %215, %213, %216 : vector<16x128xi1>, vector<16x128xf32>
    %218 = math.rsqrt %217 : vector<16x128xf32>
    %219 = arith.mulf %186, %218 : vector<16x128xf32>
    %cst_58 = arith.constant 1.000000e+00 : f32
    %220 = vector.broadcast %cst_58 : f32 to vector<16x128xf32>
    %221 = arith.select %215, %219, %220 : vector<16x128xi1>, vector<16x128xf32>
    %222 = arith.mulf %190, %218 : vector<16x128xf32>
    %cst_59 = arith.constant 0.000000e+00 : f32
    %223 = vector.broadcast %cst_59 : f32 to vector<16x128xf32>
    %224 = arith.select %215, %222, %223 : vector<16x128xi1>, vector<16x128xf32>
    %cst_60 = arith.constant 1.000000e+00 : f32
    %225 = vector.broadcast %cst_60 : f32 to vector<16x128xf32>
    %c0_61 = arith.constant 0 : index
    %c0_62 = arith.constant 0 : index
    %c0_63 = arith.constant 0 : index
    %226 = vector.load %arg2[%c0_61, %c0_62, %c0_63] : memref<12x16x128xf32, #tpu.memory_space<vmem>>, vector<1x16x128xf32>
    %227 = vector.shape_cast %226 : vector<1x16x128xf32> to vector<16x128xf32>
    %c6_64 = arith.constant 6 : index
    %c0_65 = arith.constant 0 : index
    %c0_66 = arith.constant 0 : index
    %228 = vector.load %arg2[%c6_64, %c0_65, %c0_66] : memref<12x16x128xf32, #tpu.memory_space<vmem>>, vector<1x16x128xf32>
    %229 = vector.shape_cast %228 : vector<1x16x128xf32> to vector<16x128xf32>
    %230 = arith.mulf %227, %225 : vector<16x128xf32>
    %231 = arith.addf %0, %230 : vector<16x128xf32>
    %232 = arith.mulf %229, %0 : vector<16x128xf32>
    %233 = arith.addf %231, %232 : vector<16x128xf32>
    %234 = arith.mulf %229, %225 : vector<16x128xf32>
    %235 = arith.addf %0, %234 : vector<16x128xf32>
    %236 = arith.mulf %227, %0 : vector<16x128xf32>
    %237 = arith.subf %235, %236 : vector<16x128xf32>
    %238 = arith.mulf %225, %221 : vector<16x128xf32>
    %239 = arith.mulf %0, %224 : vector<16x128xf32>
    %240 = arith.subf %238, %239 : vector<16x128xf32>
    %241 = arith.mulf %225, %224 : vector<16x128xf32>
    %242 = arith.mulf %0, %221 : vector<16x128xf32>
    %243 = arith.addf %241, %242 : vector<16x128xf32>
    %c1_67 = arith.constant 1 : index
    %c0_68 = arith.constant 0 : index
    %c0_69 = arith.constant 0 : index
    %244 = vector.load %arg2[%c1_67, %c0_68, %c0_69] : memref<12x16x128xf32, #tpu.memory_space<vmem>>, vector<1x16x128xf32>
    %245 = vector.shape_cast %244 : vector<1x16x128xf32> to vector<16x128xf32>
    %c7_70 = arith.constant 7 : index
    %c0_71 = arith.constant 0 : index
    %c0_72 = arith.constant 0 : index
    %246 = vector.load %arg2[%c7_70, %c0_71, %c0_72] : memref<12x16x128xf32, #tpu.memory_space<vmem>>, vector<1x16x128xf32>
    %247 = vector.shape_cast %246 : vector<1x16x128xf32> to vector<16x128xf32>
    %248 = arith.mulf %245, %240 : vector<16x128xf32>
    %249 = arith.addf %233, %248 : vector<16x128xf32>
    %250 = arith.mulf %247, %243 : vector<16x128xf32>
    %251 = arith.addf %249, %250 : vector<16x128xf32>
    %252 = arith.mulf %247, %240 : vector<16x128xf32>
    %253 = arith.addf %237, %252 : vector<16x128xf32>
    %254 = arith.mulf %245, %243 : vector<16x128xf32>
    %255 = arith.subf %253, %254 : vector<16x128xf32>
    %256 = arith.mulf %240, %221 : vector<16x128xf32>
    %257 = arith.mulf %243, %224 : vector<16x128xf32>
    %258 = arith.subf %256, %257 : vector<16x128xf32>
    %259 = arith.mulf %240, %224 : vector<16x128xf32>
    %260 = arith.mulf %243, %221 : vector<16x128xf32>
    %261 = arith.addf %259, %260 : vector<16x128xf32>
    %c2_73 = arith.constant 2 : index
    %c0_74 = arith.constant 0 : index
    %c0_75 = arith.constant 0 : index
    %262 = vector.load %arg2[%c2_73, %c0_74, %c0_75] : memref<12x16x128xf32, #tpu.memory_space<vmem>>, vector<1x16x128xf32>
    %263 = vector.shape_cast %262 : vector<1x16x128xf32> to vector<16x128xf32>
    %c8_76 = arith.constant 8 : index
    %c0_77 = arith.constant 0 : index
    %c0_78 = arith.constant 0 : index
    %264 = vector.load %arg2[%c8_76, %c0_77, %c0_78] : memref<12x16x128xf32, #tpu.memory_space<vmem>>, vector<1x16x128xf32>
    %265 = vector.shape_cast %264 : vector<1x16x128xf32> to vector<16x128xf32>
    %266 = arith.mulf %263, %258 : vector<16x128xf32>
    %267 = arith.addf %251, %266 : vector<16x128xf32>
    %268 = arith.mulf %265, %261 : vector<16x128xf32>
    %269 = arith.addf %267, %268 : vector<16x128xf32>
    %270 = arith.mulf %265, %258 : vector<16x128xf32>
    %271 = arith.addf %255, %270 : vector<16x128xf32>
    %272 = arith.mulf %263, %261 : vector<16x128xf32>
    %273 = arith.subf %271, %272 : vector<16x128xf32>
    %274 = arith.mulf %258, %221 : vector<16x128xf32>
    %275 = arith.mulf %261, %224 : vector<16x128xf32>
    %276 = arith.subf %274, %275 : vector<16x128xf32>
    %277 = arith.mulf %258, %224 : vector<16x128xf32>
    %278 = arith.mulf %261, %221 : vector<16x128xf32>
    %279 = arith.addf %277, %278 : vector<16x128xf32>
    %c3_79 = arith.constant 3 : index
    %c0_80 = arith.constant 0 : index
    %c0_81 = arith.constant 0 : index
    %280 = vector.load %arg2[%c3_79, %c0_80, %c0_81] : memref<12x16x128xf32, #tpu.memory_space<vmem>>, vector<1x16x128xf32>
    %281 = vector.shape_cast %280 : vector<1x16x128xf32> to vector<16x128xf32>
    %c9_82 = arith.constant 9 : index
    %c0_83 = arith.constant 0 : index
    %c0_84 = arith.constant 0 : index
    %282 = vector.load %arg2[%c9_82, %c0_83, %c0_84] : memref<12x16x128xf32, #tpu.memory_space<vmem>>, vector<1x16x128xf32>
    %283 = vector.shape_cast %282 : vector<1x16x128xf32> to vector<16x128xf32>
    %284 = arith.mulf %281, %276 : vector<16x128xf32>
    %285 = arith.addf %269, %284 : vector<16x128xf32>
    %286 = arith.mulf %283, %279 : vector<16x128xf32>
    %287 = arith.addf %285, %286 : vector<16x128xf32>
    %288 = arith.mulf %283, %276 : vector<16x128xf32>
    %289 = arith.addf %273, %288 : vector<16x128xf32>
    %290 = arith.mulf %281, %279 : vector<16x128xf32>
    %291 = arith.subf %289, %290 : vector<16x128xf32>
    %292 = arith.mulf %276, %221 : vector<16x128xf32>
    %293 = arith.mulf %279, %224 : vector<16x128xf32>
    %294 = arith.subf %292, %293 : vector<16x128xf32>
    %295 = arith.mulf %276, %224 : vector<16x128xf32>
    %296 = arith.mulf %279, %221 : vector<16x128xf32>
    %297 = arith.addf %295, %296 : vector<16x128xf32>
    %c4_85 = arith.constant 4 : index
    %c0_86 = arith.constant 0 : index
    %c0_87 = arith.constant 0 : index
    %298 = vector.load %arg2[%c4_85, %c0_86, %c0_87] : memref<12x16x128xf32, #tpu.memory_space<vmem>>, vector<1x16x128xf32>
    %299 = vector.shape_cast %298 : vector<1x16x128xf32> to vector<16x128xf32>
    %c10_88 = arith.constant 10 : index
    %c0_89 = arith.constant 0 : index
    %c0_90 = arith.constant 0 : index
    %300 = vector.load %arg2[%c10_88, %c0_89, %c0_90] : memref<12x16x128xf32, #tpu.memory_space<vmem>>, vector<1x16x128xf32>
    %301 = vector.shape_cast %300 : vector<1x16x128xf32> to vector<16x128xf32>
    %302 = arith.mulf %299, %294 : vector<16x128xf32>
    %303 = arith.addf %287, %302 : vector<16x128xf32>
    %304 = arith.mulf %301, %297 : vector<16x128xf32>
    %305 = arith.addf %303, %304 : vector<16x128xf32>
    %306 = arith.mulf %301, %294 : vector<16x128xf32>
    %307 = arith.addf %291, %306 : vector<16x128xf32>
    %308 = arith.mulf %299, %297 : vector<16x128xf32>
    %309 = arith.subf %307, %308 : vector<16x128xf32>
    %310 = arith.mulf %294, %221 : vector<16x128xf32>
    %311 = arith.mulf %297, %224 : vector<16x128xf32>
    %312 = arith.subf %310, %311 : vector<16x128xf32>
    %313 = arith.mulf %294, %224 : vector<16x128xf32>
    %314 = arith.mulf %297, %221 : vector<16x128xf32>
    %315 = arith.addf %313, %314 : vector<16x128xf32>
    %c5_91 = arith.constant 5 : index
    %c0_92 = arith.constant 0 : index
    %c0_93 = arith.constant 0 : index
    %316 = vector.load %arg2[%c5_91, %c0_92, %c0_93] : memref<12x16x128xf32, #tpu.memory_space<vmem>>, vector<1x16x128xf32>
    %317 = vector.shape_cast %316 : vector<1x16x128xf32> to vector<16x128xf32>
    %c11_94 = arith.constant 11 : index
    %c0_95 = arith.constant 0 : index
    %c0_96 = arith.constant 0 : index
    %318 = vector.load %arg2[%c11_94, %c0_95, %c0_96] : memref<12x16x128xf32, #tpu.memory_space<vmem>>, vector<1x16x128xf32>
    %319 = vector.shape_cast %318 : vector<1x16x128xf32> to vector<16x128xf32>
    %320 = arith.mulf %317, %312 : vector<16x128xf32>
    %321 = arith.addf %305, %320 : vector<16x128xf32>
    %322 = arith.mulf %319, %315 : vector<16x128xf32>
    %323 = arith.addf %321, %322 : vector<16x128xf32>
    %324 = arith.mulf %319, %312 : vector<16x128xf32>
    %325 = arith.addf %309, %324 : vector<16x128xf32>
    %326 = arith.mulf %317, %315 : vector<16x128xf32>
    %327 = arith.subf %325, %326 : vector<16x128xf32>
    %328 = arith.mulf %323, %323 : vector<16x128xf32>
    %329 = arith.mulf %327, %327 : vector<16x128xf32>
    %330 = arith.addf %328, %329 : vector<16x128xf32>
    %cst_97 = arith.constant 0.000000e+00 : f32
    %331 = vector.broadcast %cst_97 : f32 to vector<16x128xf32>
    %332 = arith.cmpf ogt, %330, %331 : vector<16x128xf32>
    %cst_98 = arith.constant 1.000000e+00 : f32
    %333 = vector.broadcast %cst_98 : f32 to vector<16x128xf32>
    %334 = arith.select %332, %330, %333 : vector<16x128xi1>, vector<16x128xf32>
    %335 = math.rsqrt %334 : vector<16x128xf32>
    %336 = arith.mulf %323, %335 : vector<16x128xf32>
    %cst_99 = arith.constant 1.000000e+00 : f32
    %337 = vector.broadcast %cst_99 : f32 to vector<16x128xf32>
    %338 = arith.select %332, %336, %337 : vector<16x128xi1>, vector<16x128xf32>
    %339 = arith.mulf %327, %335 : vector<16x128xf32>
    %cst_100 = arith.constant 0.000000e+00 : f32
    %340 = vector.broadcast %cst_100 : f32 to vector<16x128xf32>
    %341 = arith.select %332, %339, %340 : vector<16x128xi1>, vector<16x128xf32>
    %342 = math.exp %210 : vector<16x128xf32>
    %cst_101 = arith.constant 0.000000e+00 : f32
    %343 = vector.broadcast %cst_101 : f32 to vector<16x128xf32>
    %344 = arith.subf %343, %203 : vector<16x128xf32>
    %345 = math.exp %344 : vector<16x128xf32>
    %cst_102 = arith.constant 1.000000e+00 : f32
    %346 = vector.broadcast %cst_102 : f32 to vector<16x128xf32>
    %c0_103 = arith.constant 0 : index
    %c0_104 = arith.constant 0 : index
    %c0_105 = arith.constant 0 : index
    %347 = vector.load %arg2[%c0_103, %c0_104, %c0_105] : memref<12x16x128xf32, #tpu.memory_space<vmem>>, vector<1x16x128xf32>
    %348 = vector.shape_cast %347 : vector<1x16x128xf32> to vector<16x128xf32>
    %c6_106 = arith.constant 6 : index
    %c0_107 = arith.constant 0 : index
    %c0_108 = arith.constant 0 : index
    %349 = vector.load %arg2[%c6_106, %c0_107, %c0_108] : memref<12x16x128xf32, #tpu.memory_space<vmem>>, vector<1x16x128xf32>
    %350 = vector.shape_cast %349 : vector<1x16x128xf32> to vector<16x128xf32>
    %351 = arith.mulf %338, %346 : vector<16x128xf32>
    %352 = arith.mulf %341, %0 : vector<16x128xf32>
    %353 = arith.subf %351, %352 : vector<16x128xf32>
    %354 = arith.mulf %338, %0 : vector<16x128xf32>
    %355 = arith.mulf %341, %346 : vector<16x128xf32>
    %356 = arith.addf %354, %355 : vector<16x128xf32>
    %357 = arith.mulf %342, %353 : vector<16x128xf32>
    %358 = arith.mulf %342, %356 : vector<16x128xf32>
    %cst_109 = arith.constant 1.000000e+00 : f32
    %359 = vector.broadcast %cst_109 : f32 to vector<16x128xf32>
    %360 = arith.cmpf ole, %357, %359 : vector<16x128xf32>
    %cst_110 = arith.constant 0.000000e+00 : f32
    %361 = vector.broadcast %cst_110 : f32 to vector<16x128xf32>
    %362 = arith.select %360, %357, %361 : vector<16x128xi1>, vector<16x128xf32>
    %cst_111 = arith.constant 1.000000e+00 : f32
    %363 = vector.broadcast %cst_111 : f32 to vector<16x128xf32>
    %364 = arith.cmpf ole, %358, %363 : vector<16x128xf32>
    %cst_112 = arith.constant 0.000000e+00 : f32
    %365 = vector.broadcast %cst_112 : f32 to vector<16x128xf32>
    %366 = arith.select %364, %358, %365 : vector<16x128xi1>, vector<16x128xf32>
    %367 = arith.subf %348, %362 : vector<16x128xf32>
    %368 = arith.subf %350, %366 : vector<16x128xf32>
    %369 = arith.mulf %367, %367 : vector<16x128xf32>
    %370 = arith.addf %0, %369 : vector<16x128xf32>
    %371 = arith.mulf %368, %368 : vector<16x128xf32>
    %372 = arith.addf %370, %371 : vector<16x128xf32>
    %373 = arith.mulf %342, %345 : vector<16x128xf32>
    %374 = arith.mulf %346, %221 : vector<16x128xf32>
    %375 = arith.mulf %0, %224 : vector<16x128xf32>
    %376 = arith.subf %374, %375 : vector<16x128xf32>
    %377 = arith.mulf %346, %224 : vector<16x128xf32>
    %378 = arith.mulf %0, %221 : vector<16x128xf32>
    %379 = arith.addf %377, %378 : vector<16x128xf32>
    %c1_113 = arith.constant 1 : index
    %c0_114 = arith.constant 0 : index
    %c0_115 = arith.constant 0 : index
    %380 = vector.load %arg2[%c1_113, %c0_114, %c0_115] : memref<12x16x128xf32, #tpu.memory_space<vmem>>, vector<1x16x128xf32>
    %381 = vector.shape_cast %380 : vector<1x16x128xf32> to vector<16x128xf32>
    %c7_116 = arith.constant 7 : index
    %c0_117 = arith.constant 0 : index
    %c0_118 = arith.constant 0 : index
    %382 = vector.load %arg2[%c7_116, %c0_117, %c0_118] : memref<12x16x128xf32, #tpu.memory_space<vmem>>, vector<1x16x128xf32>
    %383 = vector.shape_cast %382 : vector<1x16x128xf32> to vector<16x128xf32>
    %384 = arith.mulf %338, %376 : vector<16x128xf32>
    %385 = arith.mulf %341, %379 : vector<16x128xf32>
    %386 = arith.subf %384, %385 : vector<16x128xf32>
    %387 = arith.mulf %338, %379 : vector<16x128xf32>
    %388 = arith.mulf %341, %376 : vector<16x128xf32>
    %389 = arith.addf %387, %388 : vector<16x128xf32>
    %390 = arith.mulf %373, %386 : vector<16x128xf32>
    %391 = arith.mulf %373, %389 : vector<16x128xf32>
    %cst_119 = arith.constant 1.000000e+00 : f32
    %392 = vector.broadcast %cst_119 : f32 to vector<16x128xf32>
    %393 = arith.cmpf ole, %390, %392 : vector<16x128xf32>
    %cst_120 = arith.constant 0.000000e+00 : f32
    %394 = vector.broadcast %cst_120 : f32 to vector<16x128xf32>
    %395 = arith.select %393, %390, %394 : vector<16x128xi1>, vector<16x128xf32>
    %cst_121 = arith.constant 1.000000e+00 : f32
    %396 = vector.broadcast %cst_121 : f32 to vector<16x128xf32>
    %397 = arith.cmpf ole, %391, %396 : vector<16x128xf32>
    %cst_122 = arith.constant 0.000000e+00 : f32
    %398 = vector.broadcast %cst_122 : f32 to vector<16x128xf32>
    %399 = arith.select %397, %391, %398 : vector<16x128xi1>, vector<16x128xf32>
    %400 = arith.subf %381, %395 : vector<16x128xf32>
    %401 = arith.subf %383, %399 : vector<16x128xf32>
    %402 = arith.mulf %400, %400 : vector<16x128xf32>
    %403 = arith.addf %372, %402 : vector<16x128xf32>
    %404 = arith.mulf %401, %401 : vector<16x128xf32>
    %405 = arith.addf %403, %404 : vector<16x128xf32>
    %406 = arith.mulf %373, %345 : vector<16x128xf32>
    %407 = arith.mulf %376, %221 : vector<16x128xf32>
    %408 = arith.mulf %379, %224 : vector<16x128xf32>
    %409 = arith.subf %407, %408 : vector<16x128xf32>
    %410 = arith.mulf %376, %224 : vector<16x128xf32>
    %411 = arith.mulf %379, %221 : vector<16x128xf32>
    %412 = arith.addf %410, %411 : vector<16x128xf32>
    %c2_123 = arith.constant 2 : index
    %c0_124 = arith.constant 0 : index
    %c0_125 = arith.constant 0 : index
    %413 = vector.load %arg2[%c2_123, %c0_124, %c0_125] : memref<12x16x128xf32, #tpu.memory_space<vmem>>, vector<1x16x128xf32>
    %414 = vector.shape_cast %413 : vector<1x16x128xf32> to vector<16x128xf32>
    %c8_126 = arith.constant 8 : index
    %c0_127 = arith.constant 0 : index
    %c0_128 = arith.constant 0 : index
    %415 = vector.load %arg2[%c8_126, %c0_127, %c0_128] : memref<12x16x128xf32, #tpu.memory_space<vmem>>, vector<1x16x128xf32>
    %416 = vector.shape_cast %415 : vector<1x16x128xf32> to vector<16x128xf32>
    %417 = arith.mulf %338, %409 : vector<16x128xf32>
    %418 = arith.mulf %341, %412 : vector<16x128xf32>
    %419 = arith.subf %417, %418 : vector<16x128xf32>
    %420 = arith.mulf %338, %412 : vector<16x128xf32>
    %421 = arith.mulf %341, %409 : vector<16x128xf32>
    %422 = arith.addf %420, %421 : vector<16x128xf32>
    %423 = arith.mulf %406, %419 : vector<16x128xf32>
    %424 = arith.mulf %406, %422 : vector<16x128xf32>
    %cst_129 = arith.constant 1.000000e+00 : f32
    %425 = vector.broadcast %cst_129 : f32 to vector<16x128xf32>
    %426 = arith.cmpf ole, %423, %425 : vector<16x128xf32>
    %cst_130 = arith.constant 0.000000e+00 : f32
    %427 = vector.broadcast %cst_130 : f32 to vector<16x128xf32>
    %428 = arith.select %426, %423, %427 : vector<16x128xi1>, vector<16x128xf32>
    %cst_131 = arith.constant 1.000000e+00 : f32
    %429 = vector.broadcast %cst_131 : f32 to vector<16x128xf32>
    %430 = arith.cmpf ole, %424, %429 : vector<16x128xf32>
    %cst_132 = arith.constant 0.000000e+00 : f32
    %431 = vector.broadcast %cst_132 : f32 to vector<16x128xf32>
    %432 = arith.select %430, %424, %431 : vector<16x128xi1>, vector<16x128xf32>
    %433 = arith.subf %414, %428 : vector<16x128xf32>
    %434 = arith.subf %416, %432 : vector<16x128xf32>
    %435 = arith.mulf %433, %433 : vector<16x128xf32>
    %436 = arith.addf %405, %435 : vector<16x128xf32>
    %437 = arith.mulf %434, %434 : vector<16x128xf32>
    %438 = arith.addf %436, %437 : vector<16x128xf32>
    %439 = arith.mulf %406, %345 : vector<16x128xf32>
    %440 = arith.mulf %409, %221 : vector<16x128xf32>
    %441 = arith.mulf %412, %224 : vector<16x128xf32>
    %442 = arith.subf %440, %441 : vector<16x128xf32>
    %443 = arith.mulf %409, %224 : vector<16x128xf32>
    %444 = arith.mulf %412, %221 : vector<16x128xf32>
    %445 = arith.addf %443, %444 : vector<16x128xf32>
    %c3_133 = arith.constant 3 : index
    %c0_134 = arith.constant 0 : index
    %c0_135 = arith.constant 0 : index
    %446 = vector.load %arg2[%c3_133, %c0_134, %c0_135] : memref<12x16x128xf32, #tpu.memory_space<vmem>>, vector<1x16x128xf32>
    %447 = vector.shape_cast %446 : vector<1x16x128xf32> to vector<16x128xf32>
    %c9_136 = arith.constant 9 : index
    %c0_137 = arith.constant 0 : index
    %c0_138 = arith.constant 0 : index
    %448 = vector.load %arg2[%c9_136, %c0_137, %c0_138] : memref<12x16x128xf32, #tpu.memory_space<vmem>>, vector<1x16x128xf32>
    %449 = vector.shape_cast %448 : vector<1x16x128xf32> to vector<16x128xf32>
    %450 = arith.mulf %338, %442 : vector<16x128xf32>
    %451 = arith.mulf %341, %445 : vector<16x128xf32>
    %452 = arith.subf %450, %451 : vector<16x128xf32>
    %453 = arith.mulf %338, %445 : vector<16x128xf32>
    %454 = arith.mulf %341, %442 : vector<16x128xf32>
    %455 = arith.addf %453, %454 : vector<16x128xf32>
    %456 = arith.mulf %439, %452 : vector<16x128xf32>
    %457 = arith.mulf %439, %455 : vector<16x128xf32>
    %cst_139 = arith.constant 1.000000e+00 : f32
    %458 = vector.broadcast %cst_139 : f32 to vector<16x128xf32>
    %459 = arith.cmpf ole, %456, %458 : vector<16x128xf32>
    %cst_140 = arith.constant 0.000000e+00 : f32
    %460 = vector.broadcast %cst_140 : f32 to vector<16x128xf32>
    %461 = arith.select %459, %456, %460 : vector<16x128xi1>, vector<16x128xf32>
    %cst_141 = arith.constant 1.000000e+00 : f32
    %462 = vector.broadcast %cst_141 : f32 to vector<16x128xf32>
    %463 = arith.cmpf ole, %457, %462 : vector<16x128xf32>
    %cst_142 = arith.constant 0.000000e+00 : f32
    %464 = vector.broadcast %cst_142 : f32 to vector<16x128xf32>
    %465 = arith.select %463, %457, %464 : vector<16x128xi1>, vector<16x128xf32>
    %466 = arith.subf %447, %461 : vector<16x128xf32>
    %467 = arith.subf %449, %465 : vector<16x128xf32>
    %468 = arith.mulf %466, %466 : vector<16x128xf32>
    %469 = arith.addf %438, %468 : vector<16x128xf32>
    %470 = arith.mulf %467, %467 : vector<16x128xf32>
    %471 = arith.addf %469, %470 : vector<16x128xf32>
    %472 = arith.mulf %439, %345 : vector<16x128xf32>
    %473 = arith.mulf %442, %221 : vector<16x128xf32>
    %474 = arith.mulf %445, %224 : vector<16x128xf32>
    %475 = arith.subf %473, %474 : vector<16x128xf32>
    %476 = arith.mulf %442, %224 : vector<16x128xf32>
    %477 = arith.mulf %445, %221 : vector<16x128xf32>
    %478 = arith.addf %476, %477 : vector<16x128xf32>
    %c4_143 = arith.constant 4 : index
    %c0_144 = arith.constant 0 : index
    %c0_145 = arith.constant 0 : index
    %479 = vector.load %arg2[%c4_143, %c0_144, %c0_145] : memref<12x16x128xf32, #tpu.memory_space<vmem>>, vector<1x16x128xf32>
    %480 = vector.shape_cast %479 : vector<1x16x128xf32> to vector<16x128xf32>
    %c10_146 = arith.constant 10 : index
    %c0_147 = arith.constant 0 : index
    %c0_148 = arith.constant 0 : index
    %481 = vector.load %arg2[%c10_146, %c0_147, %c0_148] : memref<12x16x128xf32, #tpu.memory_space<vmem>>, vector<1x16x128xf32>
    %482 = vector.shape_cast %481 : vector<1x16x128xf32> to vector<16x128xf32>
    %483 = arith.mulf %338, %475 : vector<16x128xf32>
    %484 = arith.mulf %341, %478 : vector<16x128xf32>
    %485 = arith.subf %483, %484 : vector<16x128xf32>
    %486 = arith.mulf %338, %478 : vector<16x128xf32>
    %487 = arith.mulf %341, %475 : vector<16x128xf32>
    %488 = arith.addf %486, %487 : vector<16x128xf32>
    %489 = arith.mulf %472, %485 : vector<16x128xf32>
    %490 = arith.mulf %472, %488 : vector<16x128xf32>
    %cst_149 = arith.constant 1.000000e+00 : f32
    %491 = vector.broadcast %cst_149 : f32 to vector<16x128xf32>
    %492 = arith.cmpf ole, %489, %491 : vector<16x128xf32>
    %cst_150 = arith.constant 0.000000e+00 : f32
    %493 = vector.broadcast %cst_150 : f32 to vector<16x128xf32>
    %494 = arith.select %492, %489, %493 : vector<16x128xi1>, vector<16x128xf32>
    %cst_151 = arith.constant 1.000000e+00 : f32
    %495 = vector.broadcast %cst_151 : f32 to vector<16x128xf32>
    %496 = arith.cmpf ole, %490, %495 : vector<16x128xf32>
    %cst_152 = arith.constant 0.000000e+00 : f32
    %497 = vector.broadcast %cst_152 : f32 to vector<16x128xf32>
    %498 = arith.select %496, %490, %497 : vector<16x128xi1>, vector<16x128xf32>
    %499 = arith.subf %480, %494 : vector<16x128xf32>
    %500 = arith.subf %482, %498 : vector<16x128xf32>
    %501 = arith.mulf %499, %499 : vector<16x128xf32>
    %502 = arith.addf %471, %501 : vector<16x128xf32>
    %503 = arith.mulf %500, %500 : vector<16x128xf32>
    %504 = arith.addf %502, %503 : vector<16x128xf32>
    %505 = arith.mulf %472, %345 : vector<16x128xf32>
    %506 = arith.mulf %475, %221 : vector<16x128xf32>
    %507 = arith.mulf %478, %224 : vector<16x128xf32>
    %508 = arith.subf %506, %507 : vector<16x128xf32>
    %509 = arith.mulf %475, %224 : vector<16x128xf32>
    %510 = arith.mulf %478, %221 : vector<16x128xf32>
    %511 = arith.addf %509, %510 : vector<16x128xf32>
    %c5_153 = arith.constant 5 : index
    %c0_154 = arith.constant 0 : index
    %c0_155 = arith.constant 0 : index
    %512 = vector.load %arg2[%c5_153, %c0_154, %c0_155] : memref<12x16x128xf32, #tpu.memory_space<vmem>>, vector<1x16x128xf32>
    %513 = vector.shape_cast %512 : vector<1x16x128xf32> to vector<16x128xf32>
    %c11_156 = arith.constant 11 : index
    %c0_157 = arith.constant 0 : index
    %c0_158 = arith.constant 0 : index
    %514 = vector.load %arg2[%c11_156, %c0_157, %c0_158] : memref<12x16x128xf32, #tpu.memory_space<vmem>>, vector<1x16x128xf32>
    %515 = vector.shape_cast %514 : vector<1x16x128xf32> to vector<16x128xf32>
    %516 = arith.mulf %338, %508 : vector<16x128xf32>
    %517 = arith.mulf %341, %511 : vector<16x128xf32>
    %518 = arith.subf %516, %517 : vector<16x128xf32>
    %519 = arith.mulf %338, %511 : vector<16x128xf32>
    %520 = arith.mulf %341, %508 : vector<16x128xf32>
    %521 = arith.addf %519, %520 : vector<16x128xf32>
    %522 = arith.mulf %505, %518 : vector<16x128xf32>
    %523 = arith.mulf %505, %521 : vector<16x128xf32>
    %cst_159 = arith.constant 1.000000e+00 : f32
    %524 = vector.broadcast %cst_159 : f32 to vector<16x128xf32>
    %525 = arith.cmpf ole, %522, %524 : vector<16x128xf32>
    %cst_160 = arith.constant 0.000000e+00 : f32
    %526 = vector.broadcast %cst_160 : f32 to vector<16x128xf32>
    %527 = arith.select %525, %522, %526 : vector<16x128xi1>, vector<16x128xf32>
    %cst_161 = arith.constant 1.000000e+00 : f32
    %528 = vector.broadcast %cst_161 : f32 to vector<16x128xf32>
    %529 = arith.cmpf ole, %523, %528 : vector<16x128xf32>
    %cst_162 = arith.constant 0.000000e+00 : f32
    %530 = vector.broadcast %cst_162 : f32 to vector<16x128xf32>
    %531 = arith.select %529, %523, %530 : vector<16x128xi1>, vector<16x128xf32>
    %532 = arith.subf %513, %527 : vector<16x128xf32>
    %533 = arith.subf %515, %531 : vector<16x128xf32>
    %534 = arith.mulf %532, %532 : vector<16x128xf32>
    %535 = arith.addf %504, %534 : vector<16x128xf32>
    %536 = arith.mulf %533, %533 : vector<16x128xf32>
    %537 = arith.addf %535, %536 : vector<16x128xf32>
    %538 = vector.shape_cast %537 : vector<16x128xf32> to vector<1x16x128xf32>
    %cst_163 = arith.constant dense<0.000000e+00> : vector<1xf32>
    %539 = vector.multi_reduction <add>, %538, %cst_163 [1, 2] : vector<1x16x128xf32> to vector<1xf32>
    %540 = vector.shape_cast %539 : vector<1xf32> to vector<1x1x1xf32>
    %541 = vector.extract %540[0, 0, 0] : f32 from vector<1x1x1xf32>
    %c0_164 = arith.constant 0 : index
    %c0_165 = arith.constant 0 : index
    %542 = memref.load %arg3[%c0_164, %c0_165] : memref<1x1xf32, #tpu.memory_space<smem>>
    memref.store %541, %arg3[%c0_164, %c0_165] : memref<1x1xf32, #tpu.memory_space<smem>>
    return
  }
  func.func @transform_0(%arg0: i32, %arg1: i32) -> (i32, i32, i32) {
    %c0_i32 = arith.constant 0 : i32
    %c0_i32_0 = arith.constant 0 : i32
    return %c0_i32, %arg0, %arg1 : i32, i32, i32
  }
  func.func @transform_1(%arg0: i32, %arg1: i32) -> (i32, i32) {
    %c0_i32 = arith.constant 0 : i32
    return %arg0, %arg1 : i32, i32
  }
}

</mosaic_0001>

<llo_original>
// kernel: tpu_custom_call.1
$region0: #{tpu_custom_call.1}
  #allocation0 [shape = 'u32[]', space=smem, size = 0x4, offset = 0x4, fixed_abs, tag = 'smem constant byte address 0x4 - core index']
  #allocation1 [shape = 'u32[144,128]{1,0:T(1,128)}', space=vmem, size = 0x12000, scoped, tag = 'internal scratch']
  %s0 = inlined_call_operand.hbm [shape: f32[12,16,128], index: 0, kind: input, shape index: {}]
  %s1 = inlined_call_operand.hbm [shape: f32[1,1], index: 1, kind: output, shape index: {}]
  %s2 = sld [smem:[#allocation0]]
  $region18: #{tpu_custom_call.1} parent=0
    _
  %s4 = ssub.s32 1, %s2
  %s5 = scalar_select 0, %s4, %s2
  $region1: #{tpu_custom_call.1} parent=0
    #allocation2 [shape = 'u8[98304]{0}', space=vmem, size = 0x18000, scoped, tag = 'input window, operand 0, single buffered']
    #allocation3 [shape = 's32[1]{0}', space=sflag, size = 0x4, scoped, tag = 'scoped memory for tpu_custom_call.1']
    #allocation4 [shape = 's32[1]{0}', space=sflag, size = 0x4, scoped, tag = 'scoped memory for tpu_custom_call.1']
    #allocation5 [shape = 'u8[512]{0}', space=smem, size = 0x200, scoped, tag = 'output window, operand 0, single buffered']
    %6 = vsyncpa [#allocation3], 0
    %7 = vsyncpa [#allocation4], 0
    // Predicated region
    $region2: #{tpu_custom_call.1} parent=1 // pred_check
      _
    $region3: #{tpu_custom_call.1} parent=1 // pred_check_branch
      %9 = sbr.rel (0) target = $region5
    $region4: #{tpu_custom_call.1} parent=1 // pred_region
      %s11 = ssub.s32 3072, 3072
      %12 = vsyncadd [#allocation3], %s11
      %s13 = sshll.u32 [#allocation2], 4
      %s14 = int_to_ptr.vmem [resolvable:$true] %s13
      %19 = dma.hbm_to_vmem [thread:$0]  %s0, 3072, %s14, [#allocation3], 128, 128, 8
    $region5: #{tpu_custom_call.1} parent=1 // pred_fallthru
      _
    // Predicated region
    $region6: #{tpu_custom_call.1} parent=1 // pred_check
      _
    $region7: #{tpu_custom_call.1} parent=1 // pred_check_branch
      %21 = sbr.rel (0) target = $region9
    $region8: #{tpu_custom_call.1} parent=1 // pred_region
      %22 = dma.done [#allocation3], 3072
    $region9: #{tpu_custom_call.1} parent=1 // pred_fallthru
      _
    %v23 = vld [vmem:[#allocation2] sm:$0xff]
    %v24 = vld [vmem:[#allocation2 + $0x8] sm:$0xff]
    %s25 = scalar_lea.vmem [#allocation2], 96
    %v26 = vld [vmem:[%s25] sm:$0xff]
    %v27 = vld [vmem:[%s25 + $0x8] sm:$0xff]
    %v28 = vmul.f32 %v23, %v23
    %v29 = vmul.f32 %v24, %v24
    %v30 = vmul.f32 %v26, %v26
    %v31 = vmul.f32 %v27, %v27
    %v32 = vadd.f32 %v28, %v30
    %v33 = vadd.f32 %v29, %v31
    %v34 = vrsqrt.pop %v32
    %v35 = vmul.f32 %v32, %v34
    %vm36 = vcmp.eq.f32.partialorder %v32, inf
    %v37 = vsel %vm36, %v32, %v35
    %vm38 = vcmp.eq.f32.partialorder %v32, 0.0
    %v39 = vand.u32 %v32, 2147483648
    %v40 = vsel %vm38, %v39, %v37
    %v41 = vrsqrt.pop %v33
    %v42 = vmul.f32 %v33, %v41
    %vm43 = vcmp.eq.f32.partialorder %v33, inf
    %v44 = vsel %vm43, %v33, %v42
    %vm45 = vcmp.eq.f32.partialorder %v33, 0.0
    %v46 = vand.u32 %v33, 2147483648
    %v47 = vsel %vm45, %v46, %v44
    %v48 = vadd.f32 %v40, 1e-08
    %v49 = vadd.f32 %v47, 1e-08
    %v50 = vlog2.pop %v48
    %v51 = vmul.f32 %v50, 0.6931472
    %v52 = vlog2.pop %v49
    %v53 = vmul.f32 %v52, 0.6931472
    %v54 = vadd.f32 %v51, 0.0
    %v55 = vadd.f32 %v53, 0.0
    %v56 = vmul.f32 %v51, -2.5
    %v57 = vmul.f32 %v53, -2.5
    %v58 = vadd.f32 %v56, 0.0
    %v59 = vadd.f32 %v57, 0.0
    %s60 = scalar_lea.vmem [#allocation2], 16
    %v61 = vld [vmem:[%s60] sm:$0xff]
    %v62 = vld [vmem:[%s60 + $0x8] sm:$0xff]
    %s63 = scalar_lea.vmem [#allocation2], 112
    %v64 = vld [vmem:[%s63] sm:$0xff]
    %v65 = vld [vmem:[%s63 + $0x8] sm:$0xff]
    %v66 = vmul.f32 %v61, %v61
    %v67 = vmul.f32 %v62, %v62
    %v68 = vmul.f32 %v64, %v64
    %v69 = vmul.f32 %v65, %v65
    %v70 = vadd.f32 %v66, %v68
    %v71 = vadd.f32 %v67, %v69
    %v72 = vrsqrt.pop %v70
    %v73 = vmul.f32 %v70, %v72
    %vm74 = vcmp.eq.f32.partialorder %v70, inf
    %v75 = vsel %vm74, %v70, %v73
    %vm76 = vcmp.eq.f32.partialorder %v70, 0.0
    %v77 = vand.u32 %v70, 2147483648
    %v78 = vsel %vm76, %v77, %v75
    %v79 = vrsqrt.pop %v71
    %v80 = vmul.f32 %v71, %v79
    %vm81 = vcmp.eq.f32.partialorder %v71, inf
    %v82 = vsel %vm81, %v71, %v80
    %vm83 = vcmp.eq.f32.partialorder %v71, 0.0
    %v84 = vand.u32 %v71, 2147483648
    %v85 = vsel %vm83, %v84, %v82
    %v86 = vadd.f32 %v78, 1e-08
    %v87 = vadd.f32 %v85, 1e-08
    %v88 = vlog2.pop %v86
    %v89 = vmul.f32 %v88, 0.6931472
    %v90 = vlog2.pop %v87
    %v91 = vmul.f32 %v90, 0.6931472
    %v92 = vadd.f32 %v54, %v89
    %v93 = vadd.f32 %v55, %v91
    %v94 = vmul.f32 %v89, -1.5
    %v95 = vmul.f32 %v91, -1.5
    %v96 = vadd.f32 %v58, %v94
    %v97 = vadd.f32 %v59, %v95
    %v98 = vmul.f32 %v23, %v61
    %v99 = vmul.f32 %v24, %v62
    %v100 = vadd.f32 %v98, 0.0
    %v101 = vadd.f32 %v99, 0.0
    %v102 = vmul.f32 %v26, %v64
    %v103 = vmul.f32 %v27, %v65
    %v104 = vadd.f32 %v100, %v102
    %v105 = vadd.f32 %v101, %v103
    %v106 = vmul.f32 %v23, %v64
    %v107 = vmul.f32 %v24, %v65
    %v108 = vadd.f32 %v106, 0.0
    %v109 = vadd.f32 %v107, 0.0
    %v110 = vmul.f32 %v26, %v61
    %v111 = vmul.f32 %v27, %v62
    %v112 = vsub.f32 %v108, %v110
    %v113 = vsub.f32 %v109, %v111
    %s114 = scalar_lea.vmem [#allocation2], 32
    %v115 = vld [vmem:[%s114] sm:$0xff]
    %v116 = vld [vmem:[%s114 + $0x8] sm:$0xff]
    %s117 = scalar_lea.vmem [#allocation2], 128
    %v118 = vld [vmem:[%s117] sm:$0xff]
    %v119 = vld [vmem:[%s117 + $0x8] sm:$0xff]
    %v120 = vmul.f32 %v115, %v115
    %v121 = vmul.f32 %v116, %v116
    %v122 = vmul.f32 %v118, %v118
    %v123 = vmul.f32 %v119, %v119
    %v124 = vadd.f32 %v120, %v122
    %v125 = vadd.f32 %v121, %v123
    %v126 = vrsqrt.pop %v124
    %v127 = vmul.f32 %v124, %v126
    %vm128 = vcmp.eq.f32.partialorder %v124, inf
    %v129 = vsel %vm128, %v124, %v127
    %vm130 = vcmp.eq.f32.partialorder %v124, 0.0
    %v131 = vand.u32 %v124, 2147483648
    %v132 = vsel %vm130, %v131, %v129
    %v133 = vrsqrt.pop %v125
    %v134 = vmul.f32 %v125, %v133
    %vm135 = vcmp.eq.f32.partialorder %v125, inf
    %v136 = vsel %vm135, %v125, %v134
    %vm137 = vcmp.eq.f32.partialorder %v125, 0.0
    %v138 = vand.u32 %v125, 2147483648
    %v139 = vsel %vm137, %v138, %v136
    %v140 = vadd.f32 %v132, 1e-08
    %v141 = vadd.f32 %v139, 1e-08
    %v142 = vlog2.pop %v140
    %v143 = vmul.f32 %v142, 0.6931472
    %v144 = vlog2.pop %v141
    %v145 = vmul.f32 %v144, 0.6931472
    %v146 = vadd.f32 %v92, %v143
    %v147 = vadd.f32 %v93, %v145
    %v148 = vmul.f32 %v143, -0.5
    %v149 = vmul.f32 %v145, -0.5
    %v150 = vadd.f32 %v96, %v148
    %v151 = vadd.f32 %v97, %v149
    %v152 = vmul.f32 %v40, 0.33333334
    %v153 = vmul.f32 %v47, 0.33333334
    %v154 = vadd.f32 %v152, %v78
    %v155 = vadd.f32 %v153, %v85
    %v156 = vmul.f32 %v132, 0.6666667
    %v157 = vmul.f32 %v139, 0.6666667
    %v158 = vadd.f32 %v154, %v156
    %v159 = vadd.f32 %v155, %v157
    %v160 = vsub.f32 %v40, %v132
    %v161 = vsub.f32 %v47, %v139
    %v162 = vmul.f32 %v158, %v158
    %v163 = vmul.f32 %v159, %v159
    %v164 = vadd.f32 %v162, 0.0
    %v165 = vadd.f32 %v163, 0.0
    %v166 = vmul.f32 %v158, %v160
    %v167 = vmul.f32 %v159, %v161
    %v168 = vadd.f32 %v166, 0.0
    %v169 = vadd.f32 %v167, 0.0
    %v170 = vmul.f32 %v160, %v160
    %v171 = vmul.f32 %v161, %v161
    %v172 = vadd.f32 %v170, 0.0
    %v173 = vadd.f32 %v171, 0.0
    %v174 = vmul.f32 %v61, %v115
    %v175 = vmul.f32 %v62, %v116
    %v176 = vadd.f32 %v104, %v174
    %v177 = vadd.f32 %v105, %v175
    %v178 = vmul.f32 %v64, %v118
    %v179 = vmul.f32 %v65, %v119
    %v180 = vadd.f32 %v176, %v178
    %v181 = vadd.f32 %v177, %v179
    %v182 = vmul.f32 %v61, %v118
    %v183 = vmul.f32 %v62, %v119
    %v184 = vadd.f32 %v112, %v182
    %v185 = vadd.f32 %v113, %v183
    %v186 = vmul.f32 %v64, %v115
    %v187 = vmul.f32 %v65, %v116
    %v188 = vsub.f32 %v184, %v186
    %v189 = vsub.f32 %v185, %v187
    %s190 = scalar_lea.vmem [#allocation2], 48
    %v191 = vld [vmem:[%s190] sm:$0xff]
    %v192 = vld [vmem:[%s190 + $0x8] sm:$0xff]
    %s193 = scalar_lea.vmem [#allocation2], 144
    %v194 = vld [vmem:[%s193] sm:$0xff]
    %v195 = vld [vmem:[%s193 + $0x8] sm:$0xff]
    %v196 = vmul.f32 %v191, %v191
    %v197 = vmul.f32 %v192, %v192
    %v198 = vmul.f32 %v194, %v194
    %v199 = vmul.f32 %v195, %v195
    %v200 = vadd.f32 %v196, %v198
    %v201 = vadd.f32 %v197, %v199
    %v202 = vrsqrt.pop %v200
    %v203 = vmul.f32 %v200, %v202
    %vm204 = vcmp.eq.f32.partialorder %v200, inf
    %v205 = vsel %vm204, %v200, %v203
    %vm206 = vcmp.eq.f32.partialorder %v200, 0.0
    %v207 = vand.u32 %v200, 2147483648
    %v208 = vsel %vm206, %v207, %v205
    %v209 = vrsqrt.pop %v201
    %v210 = vmul.f32 %v201, %v209
    %vm211 = vcmp.eq.f32.partialorder %v201, inf
    %v212 = vsel %vm211, %v201, %v210
    %vm213 = vcmp.eq.f32.partialorder %v201, 0.0
    %v214 = vand.u32 %v201, 2147483648
    %v215 = vsel %vm213, %v214, %v212
    %v216 = vadd.f32 %v208, 1e-08
    %v217 = vadd.f32 %v215, 1e-08
    %v218 = vlog2.pop %v216
    %v219 = vmul.f32 %v218, 0.6931472
    %v220 = vlog2.pop %v217
    %v221 = vmul.f32 %v220, 0.6931472
    %v222 = vadd.f32 %v146, %v219
    %v223 = vadd.f32 %v147, %v221
    %v224 = vmul.f32 %v219, 0.5
    %v225 = vmul.f32 %v221, 0.5
    %v226 = vadd.f32 %v150, %v224
    %v227 = vadd.f32 %v151, %v225
    %v228 = vmul.f32 %v78, 0.33333334
    %v229 = vmul.f32 %v85, 0.33333334
    %v230 = vadd.f32 %v228, %v132
    %v231 = vadd.f32 %v229, %v139
    %v232 = vmul.f32 %v208, 0.6666667
    %v233 = vmul.f32 %v215, 0.6666667
    %v234 = vadd.f32 %v230, %v232
    %v235 = vadd.f32 %v231, %v233
    %v236 = vsub.f32 %v78, %v208
    %v237 = vsub.f32 %v85, %v215
    %v238 = vmul.f32 %v234, %v234
    %v239 = vmul.f32 %v235, %v235
    %v240 = vadd.f32 %v164, %v238
    %v241 = vadd.f32 %v165, %v239
    %v242 = vmul.f32 %v234, %v236
    %v243 = vmul.f32 %v235, %v237
    %v244 = vadd.f32 %v168, %v242
    %v245 = vadd.f32 %v169, %v243
    %v246 = vmul.f32 %v236, %v236
    %v247 = vmul.f32 %v237, %v237
    %v248 = vadd.f32 %v172, %v246
    %v249 = vadd.f32 %v173, %v247
    %v250 = vmul.f32 %v115, %v191
    %v251 = vmul.f32 %v116, %v192
    %v252 = vadd.f32 %v180, %v250
    %v253 = vadd.f32 %v181, %v251
    %v254 = vmul.f32 %v118, %v194
    %v255 = vmul.f32 %v119, %v195
    %v256 = vadd.f32 %v252, %v254
    %v257 = vadd.f32 %v253, %v255
    %v258 = vmul.f32 %v115, %v194
    %v259 = vmul.f32 %v116, %v195
    %v260 = vadd.f32 %v188, %v258
    %v261 = vadd.f32 %v189, %v259
    %v262 = vmul.f32 %v118, %v191
    %v263 = vmul.f32 %v119, %v192
    %v264 = vsub.f32 %v260, %v262
    %v265 = vsub.f32 %v261, %v263
    %s266 = scalar_lea.vmem [#allocation2], 64
    %v267 = vld [vmem:[%s266] sm:$0xff]
    %v268 = vld [vmem:[%s266 + $0x8] sm:$0xff]
    %s269 = scalar_lea.vmem [#allocation2], 160
    %v270 = vld [vmem:[%s269] sm:$0xff]
    %v271 = vld [vmem:[%s269 + $0x8] sm:$0xff]
    %v272 = vmul.f32 %v267, %v267
    %v273 = vmul.f32 %v268, %v268
    %v274 = vmul.f32 %v270, %v270
    %v275 = vmul.f32 %v271, %v271
    %v276 = vadd.f32 %v272, %v274
    %v277 = vadd.f32 %v273, %v275
    %v278 = vrsqrt.pop %v276
    %v279 = vmul.f32 %v276, %v278
    %vm280 = vcmp.eq.f32.partialorder %v276, inf
    %v281 = vsel %vm280, %v276, %v279
    %vm282 = vcmp.eq.f32.partialorder %v276, 0.0
    %v283 = vand.u32 %v276, 2147483648
    %v284 = vsel %vm282, %v283, %v281
    %v285 = vrsqrt.pop %v277
    %v286 = vmul.f32 %v277, %v285
    %vm287 = vcmp.eq.f32.partialorder %v277, inf
    %v288 = vsel %vm287, %v277, %v286
    %vm289 = vcmp.eq.f32.partialorder %v277, 0.0
    %v290 = vand.u32 %v277, 2147483648
    %v291 = vsel %vm289, %v290, %v288
    %v292 = vadd.f32 %v284, 1e-08
    %v293 = vadd.f32 %v291, 1e-08
    %v294 = vlog2.pop %v292
    %v295 = vmul.f32 %v294, 0.6931472
    %v296 = vlog2.pop %v293
    %v297 = vmul.f32 %v296, 0.6931472
    %v298 = vadd.f32 %v222, %v295
    %v299 = vadd.f32 %v223, %v297
    %v300 = vmul.f32 %v295, 1.5
    %v301 = vmul.f32 %v297, 1.5
    %v302 = vadd.f32 %v226, %v300
    %v303 = vadd.f32 %v227, %v301
    %v304 = vmul.f32 %v132, 0.33333334
    %v305 = vmul.f32 %v139, 0.33333334
    %v306 = vadd.f32 %v304, %v208
    %v307 = vadd.f32 %v305, %v215
    %v308 = vmul.f32 %v284, 0.6666667
    %v309 = vmul.f32 %v291, 0.6666667
    %v310 = vadd.f32 %v306, %v308
    %v311 = vadd.f32 %v307, %v309
    %v312 = vsub.f32 %v132, %v284
    %v313 = vsub.f32 %v139, %v291
    %v314 = vmul.f32 %v310, %v310
    %v315 = vmul.f32 %v311, %v311
    %v316 = vadd.f32 %v240, %v314
    %v317 = vadd.f32 %v241, %v315
    %v318 = vmul.f32 %v310, %v312
    %v319 = vmul.f32 %v311, %v313
    %v320 = vadd.f32 %v244, %v318
    %v321 = vadd.f32 %v245, %v319
    %v322 = vmul.f32 %v312, %v312
    %v323 = vmul.f32 %v313, %v313
    %v324 = vadd.f32 %v248, %v322
    %v325 = vadd.f32 %v249, %v323
    %v326 = vmul.f32 %v191, %v267
    %v327 = vmul.f32 %v192, %v268
    %v328 = vadd.f32 %v256, %v326
    %v329 = vadd.f32 %v257, %v327
    %v330 = vmul.f32 %v194, %v270
    %v331 = vmul.f32 %v195, %v271
    %v332 = vadd.f32 %v328, %v330
    %v333 = vadd.f32 %v329, %v331
    %v334 = vmul.f32 %v191, %v270
    %v335 = vmul.f32 %v192, %v271
    %v336 = vadd.f32 %v264, %v334
    %v337 = vadd.f32 %v265, %v335
    %v338 = vmul.f32 %v194, %v267
    %v339 = vmul.f32 %v195, %v268
    %v340 = vsub.f32 %v336, %v338
    %v341 = vsub.f32 %v337, %v339
    %s342 = scalar_lea.vmem [#allocation2], 80
    %v343 = vld [vmem:[%s342] sm:$0xff]
    %v344 = vld [vmem:[%s342 + $0x8] sm:$0xff]
    %s345 = scalar_lea.vmem [#allocation2], 176
    %v346 = vld [vmem:[%s345] sm:$0xff]
    %v347 = vld [vmem:[%s345 + $0x8] sm:$0xff]
    %v348 = vmul.f32 %v343, %v343
    %v349 = vmul.f32 %v344, %v344
    %v350 = vmul.f32 %v346, %v346
    %v351 = vmul.f32 %v347, %v347
    %v352 = vadd.f32 %v348, %v350
    %v353 = vadd.f32 %v349, %v351
    %v354 = vrsqrt.pop %v352
    %v355 = vmul.f32 %v352, %v354
    %vm356 = vcmp.eq.f32.partialorder %v352, inf
    %v357 = vsel %vm356, %v352, %v355
    %vm358 = vcmp.eq.f32.partialorder %v352, 0.0
    %v359 = vand.u32 %v352, 2147483648
    %v360 = vsel %vm358, %v359, %v357
    %v361 = vrsqrt.pop %v353
    %v362 = vmul.f32 %v353, %v361
    %vm363 = vcmp.eq.f32.partialorder %v353, inf
    %v364 = vsel %vm363, %v353, %v362
    %vm365 = vcmp.eq.f32.partialorder %v353, 0.0
    %v366 = vand.u32 %v353, 2147483648
    %v367 = vsel %vm365, %v366, %v364
    %v368 = vadd.f32 %v360, 1e-08
    %v369 = vadd.f32 %v367, 1e-08
    %v370 = vlog2.pop %v368
    %v371 = vmul.f32 %v370, 0.6931472
    %v372 = vlog2.pop %v369
    %v373 = vmul.f32 %v372, 0.6931472
    %v374 = vadd.f32 %v298, %v371
    %v375 = vadd.f32 %v299, %v373
    %v376 = vmul.f32 %v371, 2.5
    %v377 = vmul.f32 %v373, 2.5
    %v378 = vadd.f32 %v302, %v376
    %v379 = vadd.f32 %v303, %v377
    %v380 = vmul.f32 %v208, 0.33333334
    %v381 = vmul.f32 %v215, 0.33333334
    %v382 = vadd.f32 %v380, %v284
    %v383 = vadd.f32 %v381, %v291
    %v384 = vmul.f32 %v360, 0.6666667
    %v385 = vmul.f32 %v367, 0.6666667
    %v386 = vadd.f32 %v382, %v384
    %v387 = vadd.f32 %v383, %v385
    %v388 = vsub.f32 %v208, %v360
    %v389 = vsub.f32 %v215, %v367
    %v390 = vmul.f32 %v386, %v386
    %v391 = vmul.f32 %v387, %v387
    %v392 = vadd.f32 %v316, %v390
    %v393 = vadd.f32 %v317, %v391
    %v394 = vmul.f32 %v386, %v388
    %v395 = vmul.f32 %v387, %v389
    %v396 = vadd.f32 %v320, %v394
    %v397 = vadd.f32 %v321, %v395
    %v398 = vmul.f32 %v388, %v388
    %v399 = vmul.f32 %v389, %v389
    %v400 = vadd.f32 %v324, %v398
    %v401 = vadd.f32 %v325, %v399
    %v402 = vmul.f32 %v267, %v343
    %v403 = vmul.f32 %v268, %v344
    %v404 = vadd.f32 %v332, %v402
    %v405 = vadd.f32 %v333, %v403
    %v406 = vmul.f32 %v270, %v346
    %v407 = vmul.f32 %v271, %v347
    %v408 = vadd.f32 %v404, %v406
    %v409 = vadd.f32 %v405, %v407
    %v410 = vmul.f32 %v267, %v346
    %v411 = vmul.f32 %v268, %v347
    %v412 = vadd.f32 %v340, %v410
    %v413 = vadd.f32 %v341, %v411
    %v414 = vmul.f32 %v270, %v343
    %v415 = vmul.f32 %v271, %v344
    %v416 = vsub.f32 %v412, %v414
    %v417 = vsub.f32 %v413, %v415
    %v418 = vmul.f32 %v400, 0.33333334
    %v419 = vmul.f32 %v401, 0.33333334
    %v420 = vadd.f32 %v396, %v418
    %v421 = vadd.f32 %v397, %v419
    %v422 = vmul.f32 %v396, 0.33333334
    %v423 = vmul.f32 %v397, 0.33333334
    %v424 = vadd.f32 %v422, %v392
    %v425 = vadd.f32 %v423, %v393
    %vm426 = vcmp.ne.f32.partialorder %v424, 0.0
    %vm427 = vcmp.ne.f32.partialorder %v425, 0.0
    %v428 = vsel %vm426, %v424, 1.0
    %v429 = vsel %vm427, %v425, 1.0
    %v430 = vrcp.pop %v428
    %v431 = vmul.f32 %v420, %v430
    %v432 = vrcp.pop %v429
    %v433 = vmul.f32 %v421, %v432
    %v434 = vsel %vm426, %v431, 0.0
    %v435 = vsel %vm427, %v433, 0.0
    %v436 = vmul.f32 %v378, 0.057142857
    %v437 = vmul.f32 %v379, 0.057142857
    %v438 = vmul.f32 %v374, 0.16666667
    %v439 = vmul.f32 %v375, 0.16666667
    %v440 = vmul.f32 %v436, 2.5
    %v441 = vmul.f32 %v437, 2.5
    %v442 = vsub.f32 %v438, %v440
    %v443 = vsub.f32 %v439, %v441
    %v444 = vmul.f32 %v408, %v408
    %v445 = vmul.f32 %v409, %v409
    %v446 = vmul.f32 %v416, %v416
    %v447 = vmul.f32 %v417, %v417
    %v448 = vadd.f32 %v444, %v446
    %v449 = vadd.f32 %v445, %v447
    %vm450 = vcmp.gt.f32.partialorder %v448, 0.0
    %vm451 = vcmp.gt.f32.partialorder %v449, 0.0
    %v452 = vsel %vm450, %v448, 1.0
    %v453 = vsel %vm451, %v449, 1.0
    %v454 = vrsqrt.pop %v452
    %v455 = vrsqrt.pop %v453
    %v456 = vmul.f32 %v408, %v454
    %v457 = vmul.f32 %v409, %v455
    %v458 = vsel %vm450, %v456, 1.0
    %v459 = vsel %vm451, %v457, 1.0
    %v460 = vmul.f32 %v416, %v454
    %v461 = vmul.f32 %v417, %v455
    %v462 = vsel %vm450, %v460, 0.0
    %v463 = vsel %vm451, %v461, 0.0
    %v464 = vadd.f32 %v23, 0.0
    %v465 = vadd.f32 %v24, 0.0
    %v466 = vmul.f32 %v26, 0.0
    %v467 = vmul.f32 %v27, 0.0
    %v468 = vadd.f32 %v464, %v466
    %v469 = vadd.f32 %v465, %v467
    %v470 = vadd.f32 %v26, 0.0
    %v471 = vadd.f32 %v27, 0.0
    %v472 = vmul.f32 %v23, 0.0
    %v473 = vmul.f32 %v24, 0.0
    %v474 = vsub.f32 %v470, %v472
    %v475 = vsub.f32 %v471, %v473
    %v476 = vmul.f32 %v462, 0.0
    %v477 = vmul.f32 %v463, 0.0
    %v478 = vsub.f32 %v458, %v476
    %v479 = vsub.f32 %v459, %v477
    %v480 = vmul.f32 %v458, 0.0
    %v481 = vmul.f32 %v459, 0.0
    %v482 = vadd.f32 %v462, %v480
    %v483 = vadd.f32 %v463, %v481
    %v484 = vmul.f32 %v61, %v478
    %v485 = vmul.f32 %v62, %v479
    %v486 = vadd.f32 %v468, %v484
    %v487 = vadd.f32 %v469, %v485
    %v488 = vmul.f32 %v64, %v482
    %v489 = vmul.f32 %v65, %v483
    %v490 = vadd.f32 %v486, %v488
    %v491 = vadd.f32 %v487, %v489
    %v492 = vmul.f32 %v64, %v478
    %v493 = vmul.f32 %v65, %v479
    %v494 = vadd.f32 %v474, %v492
    %v495 = vadd.f32 %v475, %v493
    %v496 = vmul.f32 %v61, %v482
    %v497 = vmul.f32 %v62, %v483
    %v498 = vsub.f32 %v494, %v496
    %v499 = vsub.f32 %v495, %v497
    %v500 = vmul.f32 %v478, %v458
    %v501 = vmul.f32 %v479, %v459
    %v502 = vmul.f32 %v482, %v462
    %v503 = vmul.f32 %v483, %v463
    %v504 = vsub.f32 %v500, %v502
    %v505 = vsub.f32 %v501, %v503
    %v506 = vmul.f32 %v478, %v462
    %v507 = vmul.f32 %v479, %v463
    %v508 = vmul.f32 %v482, %v458
    %v509 = vmul.f32 %v483, %v459
    %v510 = vadd.f32 %v506, %v508
    %v511 = vadd.f32 %v507, %v509
    %v512 = vmul.f32 %v115, %v504
    %v513 = vmul.f32 %v116, %v505
    %v514 = vadd.f32 %v490, %v512
    %v515 = vadd.f32 %v491, %v513
    %v516 = vmul.f32 %v118, %v510
    %v517 = vmul.f32 %v119, %v511
    %v518 = vadd.f32 %v514, %v516
    %v519 = vadd.f32 %v515, %v517
    %v520 = vmul.f32 %v118, %v504
    %v521 = vmul.f32 %v119, %v505
    %v522 = vadd.f32 %v498, %v520
    %v523 = vadd.f32 %v499, %v521
    %v524 = vmul.f32 %v115, %v510
    %v525 = vmul.f32 %v116, %v511
    %v526 = vsub.f32 %v522, %v524
    %v527 = vsub.f32 %v523, %v525
    %v528 = vmul.f32 %v504, %v458
    %v529 = vmul.f32 %v505, %v459
    %v530 = vmul.f32 %v510, %v462
    %v531 = vmul.f32 %v511, %v463
    %v532 = vsub.f32 %v528, %v530
    %v533 = vsub.f32 %v529, %v531
    %v534 = vmul.f32 %v504, %v462
    %v535 = vmul.f32 %v505, %v463
    %v536 = vmul.f32 %v510, %v458
    %v537 = vmul.f32 %v511, %v459
    %v538 = vadd.f32 %v534, %v536
    %v539 = vadd.f32 %v535, %v537
    %v540 = vmul.f32 %v191, %v532
    %v541 = vmul.f32 %v192, %v533
    %v542 = vadd.f32 %v518, %v540
    %v543 = vadd.f32 %v519, %v541
    %v544 = vmul.f32 %v194, %v538
    %v545 = vmul.f32 %v195, %v539
    %v546 = vadd.f32 %v542, %v544
    %v547 = vadd.f32 %v543, %v545
    %v548 = vmul.f32 %v194, %v532
    %v549 = vmul.f32 %v195, %v533
    %v550 = vadd.f32 %v526, %v548
    %v551 = vadd.f32 %v527, %v549
    %v552 = vmul.f32 %v191, %v538
    %v553 = vmul.f32 %v192, %v539
    %v554 = vsub.f32 %v550, %v552
    %v555 = vsub.f32 %v551, %v553
    %v556 = vmul.f32 %v532, %v458
    %v557 = vmul.f32 %v533, %v459
    %v558 = vmul.f32 %v538, %v462
    %v559 = vmul.f32 %v539, %v463
    %v560 = vsub.f32 %v556, %v558
    %v561 = vsub.f32 %v557, %v559
    %v562 = vmul.f32 %v532, %v462
    %v563 = vmul.f32 %v533, %v463
    %v564 = vmul.f32 %v538, %v458
    %v565 = vmul.f32 %v539, %v459
    %v566 = vadd.f32 %v562, %v564
    %v567 = vadd.f32 %v563, %v565
    %v568 = vmul.f32 %v267, %v560
    %v569 = vmul.f32 %v268, %v561
    %v570 = vadd.f32 %v546, %v568
    %v571 = vadd.f32 %v547, %v569
    %v572 = vmul.f32 %v270, %v566
    %v573 = vmul.f32 %v271, %v567
    %v574 = vadd.f32 %v570, %v572
    %v575 = vadd.f32 %v571, %v573
    %v576 = vmul.f32 %v270, %v560
    %v577 = vmul.f32 %v271, %v561
    %v578 = vadd.f32 %v554, %v576
    %v579 = vadd.f32 %v555, %v577
    %v580 = vmul.f32 %v267, %v566
    %v581 = vmul.f32 %v268, %v567
    %v582 = vsub.f32 %v578, %v580
    %v583 = vsub.f32 %v579, %v581
    %v584 = vmul.f32 %v560, %v458
    %v585 = vmul.f32 %v561, %v459
    %v586 = vmul.f32 %v566, %v462
    %v587 = vmul.f32 %v567, %v463
    %v588 = vsub.f32 %v584, %v586
    %v589 = vsub.f32 %v585, %v587
    %v590 = vmul.f32 %v560, %v462
    %v591 = vmul.f32 %v561, %v463
    %v592 = vmul.f32 %v566, %v458
    %v593 = vmul.f32 %v567, %v459
    %v594 = vadd.f32 %v590, %v592
    %v595 = vadd.f32 %v591, %v593
    %v596 = vmul.f32 %v343, %v588
    %v597 = vmul.f32 %v344, %v589
    %v598 = vadd.f32 %v574, %v596
    %v599 = vadd.f32 %v575, %v597
    %v600 = vmul.f32 %v346, %v594
    %v601 = vmul.f32 %v347, %v595
    %v602 = vadd.f32 %v598, %v600
    %v603 = vadd.f32 %v599, %v601
    %v604 = vmul.f32 %v346, %v588
    %v605 = vmul.f32 %v347, %v589
    %v606 = vadd.f32 %v582, %v604
    %v607 = vadd.f32 %v583, %v605
    %v608 = vmul.f32 %v343, %v594
    %v609 = vmul.f32 %v344, %v595
    %v610 = vsub.f32 %v606, %v608
    %v611 = vsub.f32 %v607, %v609
    %v612 = vmul.f32 %v602, %v602
    %v613 = vmul.f32 %v603, %v603
    %v614 = vmul.f32 %v610, %v610
    %v615 = vmul.f32 %v611, %v611
    %v616 = vadd.f32 %v612, %v614
    %v617 = vadd.f32 %v613, %v615
    %vm618 = vcmp.gt.f32.partialorder %v616, 0.0
    %vm619 = vcmp.gt.f32.partialorder %v617, 0.0
    %v620 = vsel %vm618, %v616, 1.0
    %v621 = vsel %vm619, %v617, 1.0
    %v622 = vrsqrt.pop %v620
    %v623 = vrsqrt.pop %v621
    %v624 = vmul.f32 %v602, %v622
    %v625 = vmul.f32 %v603, %v623
    %v626 = vsel %vm618, %v624, 1.0
    %v627 = vsel %vm619, %v625, 1.0
    %v628 = vmul.f32 %v610, %v622
    %v629 = vmul.f32 %v611, %v623
    %v630 = vsel %vm618, %v628, 0.0
    %v631 = vsel %vm619, %v629, 0.0
    %v632 = vmul.f32 %v442, 1.442695
    %v633 = vpow.pop %v632
    %v634 = vmul.f32 %v443, 1.442695
    %v635 = vpow.pop %v634
    %v636 = vsub.f32 0.0, %v434
    %v637 = vsub.f32 0.0, %v435
    %v638 = vmul.f32 %v636, 1.442695
    %v639 = vpow.pop %v638
    %v640 = vmul.f32 %v637, 1.442695
    %v641 = vpow.pop %v640
    %v642 = vmul.f32 %v630, 0.0
    %v643 = vmul.f32 %v631, 0.0
    %v644 = vsub.f32 %v626, %v642
    %v645 = vsub.f32 %v627, %v643
    %v646 = vmul.f32 %v626, 0.0
    %v647 = vmul.f32 %v627, 0.0
    %v648 = vadd.f32 %v646, %v630
    %v649 = vadd.f32 %v647, %v631
    %v650 = vmul.f32 %v633, %v644
    %v651 = vmul.f32 %v635, %v645
    %v652 = vmul.f32 %v633, %v648
    %v653 = vmul.f32 %v635, %v649
    %vm654 = vcmp.le.f32.partialorder %v650, 1.0
    %vm655 = vcmp.le.f32.partialorder %v651, 1.0
    %v656 = vsel %vm654, %v650, 0.0
    %v657 = vsel %vm655, %v651, 0.0
    %vm658 = vcmp.le.f32.partialorder %v652, 1.0
    %vm659 = vcmp.le.f32.partialorder %v653, 1.0
    %v660 = vsel %vm658, %v652, 0.0
    %v661 = vsel %vm659, %v653, 0.0
    %v662 = vsub.f32 %v23, %v656
    %v663 = vsub.f32 %v24, %v657
    %v664 = vsub.f32 %v26, %v660
    %v665 = vsub.f32 %v27, %v661
    %v666 = vmul.f32 %v662, %v662
    %v667 = vmul.f32 %v663, %v663
    %v668 = vadd.f32 %v666, 0.0
    %v669 = vadd.f32 %v667, 0.0
    %v670 = vmul.f32 %v664, %v664
    %v671 = vmul.f32 %v665, %v665
    %v672 = vadd.f32 %v668, %v670
    %v673 = vadd.f32 %v669, %v671
    %v674 = vmul.f32 %v633, %v639
    %v675 = vmul.f32 %v635, %v641
    %v676 = vmul.f32 %v626, %v478
    %v677 = vmul.f32 %v627, %v479
    %v678 = vmul.f32 %v630, %v482
    %v679 = vmul.f32 %v631, %v483
    %v680 = vsub.f32 %v676, %v678
    %v681 = vsub.f32 %v677, %v679
    %v682 = vmul.f32 %v626, %v482
    %v683 = vmul.f32 %v627, %v483
    %v684 = vmul.f32 %v630, %v478
    %v685 = vmul.f32 %v631, %v479
    %v686 = vadd.f32 %v682, %v684
    %v687 = vadd.f32 %v683, %v685
    %v688 = vmul.f32 %v674, %v680
    %v689 = vmul.f32 %v675, %v681
    %v690 = vmul.f32 %v674, %v686
    %v691 = vmul.f32 %v675, %v687
    %vm692 = vcmp.le.f32.partialorder %v688, 1.0
    %vm693 = vcmp.le.f32.partialorder %v689, 1.0
    %v694 = vsel %vm692, %v688, 0.0
    %v695 = vsel %vm693, %v689, 0.0
    %vm696 = vcmp.le.f32.partialorder %v690, 1.0
    %vm697 = vcmp.le.f32.partialorder %v691, 1.0
    %v698 = vsel %vm696, %v690, 0.0
    %v699 = vsel %vm697, %v691, 0.0
    %v700 = vsub.f32 %v61, %v694
    %v701 = vsub.f32 %v62, %v695
    %v702 = vsub.f32 %v64, %v698
    %v703 = vsub.f32 %v65, %v699
    %v704 = vmul.f32 %v700, %v700
    %v705 = vmul.f32 %v701, %v701
    %v706 = vadd.f32 %v672, %v704
    %v707 = vadd.f32 %v673, %v705
    %v708 = vmul.f32 %v702, %v702
    %v709 = vmul.f32 %v703, %v703
    %v710 = vadd.f32 %v706, %v708
    %v711 = vadd.f32 %v707, %v709
    %v712 = vmul.f32 %v674, %v639
    %v713 = vmul.f32 %v675, %v641
    %v714 = vmul.f32 %v626, %v504
    %v715 = vmul.f32 %v627, %v505
    %v716 = vmul.f32 %v630, %v510
    %v717 = vmul.f32 %v631, %v511
    %v718 = vsub.f32 %v714, %v716
    %v719 = vsub.f32 %v715, %v717
    %v720 = vmul.f32 %v626, %v510
    %v721 = vmul.f32 %v627, %v511
    %v722 = vmul.f32 %v630, %v504
    %v723 = vmul.f32 %v631, %v505
    %v724 = vadd.f32 %v720, %v722
    %v725 = vadd.f32 %v721, %v723
    %v726 = vmul.f32 %v712, %v718
    %v727 = vmul.f32 %v713, %v719
    %v728 = vmul.f32 %v712, %v724
    %v729 = vmul.f32 %v713, %v725
    %vm730 = vcmp.le.f32.partialorder %v726, 1.0
    %vm731 = vcmp.le.f32.partialorder %v727, 1.0
    %v732 = vsel %vm730, %v726, 0.0
    %v733 = vsel %vm731, %v727, 0.0
    %vm734 = vcmp.le.f32.partialorder %v728, 1.0
    %vm735 = vcmp.le.f32.partialorder %v729, 1.0
    %v736 = vsel %vm734, %v728, 0.0
    %v737 = vsel %vm735, %v729, 0.0
    %v738 = vsub.f32 %v115, %v732
    %v739 = vsub.f32 %v116, %v733
    %v740 = vsub.f32 %v118, %v736
    %v741 = vsub.f32 %v119, %v737
    %v742 = vmul.f32 %v738, %v738
    %v743 = vmul.f32 %v739, %v739
    %v744 = vadd.f32 %v710, %v742
    %v745 = vadd.f32 %v711, %v743
    %v746 = vmul.f32 %v740, %v740
    %v747 = vmul.f32 %v741, %v741
    %v748 = vadd.f32 %v744, %v746
    %v749 = vadd.f32 %v745, %v747
    %v750 = vmul.f32 %v712, %v639
    %v751 = vmul.f32 %v713, %v641
    %v752 = vmul.f32 %v626, %v532
    %v753 = vmul.f32 %v627, %v533
    %v754 = vmul.f32 %v630, %v538
    %v755 = vmul.f32 %v631, %v539
    %v756 = vsub.f32 %v752, %v754
    %v757 = vsub.f32 %v753, %v755
    %v758 = vmul.f32 %v626, %v538
    %v759 = vmul.f32 %v627, %v539
    %v760 = vmul.f32 %v630, %v532
    %v761 = vmul.f32 %v631, %v533
    %v762 = vadd.f32 %v758, %v760
    %v763 = vadd.f32 %v759, %v761
    %v764 = vmul.f32 %v750, %v756
    %v765 = vmul.f32 %v751, %v757
    %v766 = vmul.f32 %v750, %v762
    %v767 = vmul.f32 %v751, %v763
    %vm768 = vcmp.le.f32.partialorder %v764, 1.0
    %vm769 = vcmp.le.f32.partialorder %v765, 1.0
    %v770 = vsel %vm768, %v764, 0.0
    %v771 = vsel %vm769, %v765, 0.0
    %vm772 = vcmp.le.f32.partialorder %v766, 1.0
    %vm773 = vcmp.le.f32.partialorder %v767, 1.0
    %v774 = vsel %vm772, %v766, 0.0
    %v775 = vsel %vm773, %v767, 0.0
    %v776 = vsub.f32 %v191, %v770
    %v777 = vsub.f32 %v192, %v771
    %v778 = vsub.f32 %v194, %v774
    %v779 = vsub.f32 %v195, %v775
    %v780 = vmul.f32 %v776, %v776
    %v781 = vmul.f32 %v777, %v777
    %v782 = vadd.f32 %v748, %v780
    %v783 = vadd.f32 %v749, %v781
    %v784 = vmul.f32 %v778, %v778
    %v785 = vmul.f32 %v779, %v779
    %v786 = vadd.f32 %v782, %v784
    %v787 = vadd.f32 %v783, %v785
    %v788 = vmul.f32 %v750, %v639
    %v789 = vmul.f32 %v751, %v641
    %v790 = vmul.f32 %v626, %v560
    %v791 = vmul.f32 %v627, %v561
    %v792 = vmul.f32 %v630, %v566
    %v793 = vmul.f32 %v631, %v567
    %v794 = vsub.f32 %v790, %v792
    %v795 = vsub.f32 %v791, %v793
    %v796 = vmul.f32 %v626, %v566
    %v797 = vmul.f32 %v627, %v567
    %v798 = vmul.f32 %v630, %v560
    %v799 = vmul.f32 %v631, %v561
    %v800 = vadd.f32 %v796, %v798
    %v801 = vadd.f32 %v797, %v799
    %v802 = vmul.f32 %v788, %v794
    %v803 = vmul.f32 %v789, %v795
    %v804 = vmul.f32 %v788, %v800
    %v805 = vmul.f32 %v789, %v801
    %vm806 = vcmp.le.f32.partialorder %v802, 1.0
    %vm807 = vcmp.le.f32.partialorder %v803, 1.0
    %v808 = vsel %vm806, %v802, 0.0
    %v809 = vsel %vm807, %v803, 0.0
    %vm810 = vcmp.le.f32.partialorder %v804, 1.0
    %vm811 = vcmp.le.f32.partialorder %v805, 1.0
    %v812 = vsel %vm810, %v804, 0.0
    %v813 = vsel %vm811, %v805, 0.0
    %v814 = vsub.f32 %v267, %v808
    %v815 = vsub.f32 %v268, %v809
    %v816 = vsub.f32 %v270, %v812
    %v817 = vsub.f32 %v271, %v813
    %v818 = vmul.f32 %v814, %v814
    %v819 = vmul.f32 %v815, %v815
    %v820 = vadd.f32 %v786, %v818
    %v821 = vadd.f32 %v787, %v819
    %v822 = vmul.f32 %v816, %v816
    %v823 = vmul.f32 %v817, %v817
    %v824 = vadd.f32 %v820, %v822
    %v825 = vadd.f32 %v821, %v823
    %v826 = vmul.f32 %v788, %v639
    %v827 = vmul.f32 %v789, %v641
    %v828 = vmul.f32 %v626, %v588
    %v829 = vmul.f32 %v627, %v589
    %v830 = vmul.f32 %v630, %v594
    %v831 = vmul.f32 %v631, %v595
    %v832 = vsub.f32 %v828, %v830
    %v833 = vsub.f32 %v829, %v831
    %v834 = vmul.f32 %v626, %v594
    %v835 = vmul.f32 %v627, %v595
    %v836 = vmul.f32 %v630, %v588
    %v837 = vmul.f32 %v631, %v589
    %v838 = vadd.f32 %v834, %v836
    %v839 = vadd.f32 %v835, %v837
    %v840 = vmul.f32 %v826, %v832
    %v841 = vmul.f32 %v827, %v833
    %v842 = vmul.f32 %v826, %v838
    %v843 = vmul.f32 %v827, %v839
    %vm844 = vcmp.le.f32.partialorder %v840, 1.0
    %vm845 = vcmp.le.f32.partialorder %v841, 1.0
    %v846 = vsel %vm844, %v840, 0.0
    %v847 = vsel %vm845, %v841, 0.0
    %vm848 = vcmp.le.f32.partialorder %v842, 1.0
    %vm849 = vcmp.le.f32.partialorder %v843, 1.0
    %v850 = vsel %vm848, %v842, 0.0
    %v851 = vsel %vm849, %v843, 0.0
    %v852 = vsub.f32 %v343, %v846
    %v853 = vsub.f32 %v344, %v847
    %v854 = vsub.f32 %v346, %v850
    %v855 = vsub.f32 %v347, %v851
    %v856 = vmul.f32 %v852, %v852
    %v857 = vmul.f32 %v853, %v853
    %v858 = vadd.f32 %v824, %v856
    %v859 = vadd.f32 %v825, %v857
    %v860 = vmul.f32 %v854, %v854
    %v861 = vmul.f32 %v855, %v855
    %v862 = vadd.f32 %v858, %v860
    %v863 = vadd.f32 %v859, %v861
    %v864 = vadd.f32 %v862, %v863
    %865 = vadd.xlane.f32.xlu0 %v864
    %v866 = vpop.xlane.xlu0 %865
    %v867 = vrot.slane %v866, 4
    %v868 = vadd.f32 %v866, %v867
    %v869 = vrot.slane %v868, 2
    %v870 = vadd.f32 %v868, %v869
    %v871 = vrot.slane %v870, 1
    %v872 = vadd.f32 %v870, %v871
    %s873 = vtos %v872
    %s874 = scalar_lea.smem [#allocation5], 0
    %875 = sst [smem:[%s874]] %s873
    // Predicated region
    $region10: #{tpu_custom_call.1} parent=1 // pred_check
      _
    $region11: #{tpu_custom_call.1} parent=1 // pred_check_branch
      %877 = sbr.rel (0) target = $region13
    $region12: #{tpu_custom_call.1} parent=1 // pred_region
      %s879 = ssub.s32 16, 16
      %880 = vsyncadd [#allocation4], %s879
      %883 = dma.smem_to_hbm [#allocation5], 16, %s1, [#allocation4]
    $region13: #{tpu_custom_call.1} parent=1 // pred_fallthru
      _
    // Predicated region
    $region14: #{tpu_custom_call.1} parent=1 // pred_check
      _
    $region15: #{tpu_custom_call.1} parent=1 // pred_check_branch
      %885 = sbr.rel (0) target = $region17
    $region16: #{tpu_custom_call.1} parent=1 // pred_region
      %886 = dma.done [#allocation4], 16
    $region17: #{tpu_custom_call.1} parent=1 // pred_fallthru
      _
    %887 = sfence
    %888 = vsyncpa [#allocation3], 1
    %889 = vsyncpa [#allocation4], 1

</llo_original>
